<compile_context>
chip_gen: v5e
topology: v5e:2x2
jax: 0.10.0
libtpu: 0.0.40
codegen_flags: <defaults>
</compile_context>

<pallas_src>
import numpy as np
import jax
import jax.numpy as jnp
from jax.scipy.linalg import block_diag
from jax.experimental import pallas as pl
from jax.experimental.pallas import tpu as pltpu

FEAT_SIZE = 32      # cfg.MODEL.ROI_BOX_HEAD.MLP_HEAD_DIM
GATE_OUT_DIM = 32   # cfg.MODEL.RELATION.FEATURE_REFINE.MP_UNIT_OUTPUT_DIM
NUM_GEN = 4         # p_s, p_o, o_p, s_p generators, packed along the lane axis
LANES = NUM_GEN * FEAT_SIZE          # 128 (lane-packed edge slab width)
ROW_PAD = 16                         # node-row padding (bf16 sublane tile)


def _round_up(x, m):
    return ((x + m - 1) // m) * m


def _tile_e(ep):
    """Edge-tile size; ep is always a multiple of 128."""
    if ep >= 2048 and ep % 512 == 0:
        return 512
    if ep >= 512 and ep % 256 == 0:
        return 256
    return 128


# ------------------------------ fused Pallas kernel ------------------------------

def _fused_mp_kernel(src_ref, tgt_ref,                    # (TE,128) bf16 lane-packed edge slabs
                     a_subj_ref, a_obj_ref, a_phr_ref,    # (Ni,TE),(Ni,TE),(Np,TE) bf16 scatter-mean/2
                     ws_ref, wt_ref, bg_ref, gavg_ref,    # gate weights / bias / block-avg matrix
                     inst_ref, phra_ref,                  # (Ni,32),(Np,32) bf16 node features
                     wi1_ref, wi2_ref, bi_ref,            # instance MassageApply (lane-packed 64 wide)
                     wp1_ref, wp2_ref, bp_ref,            # phrase   MassageApply
                     inst_out_ref, phra_out_ref,          # (Ni,32),(Np,32) f32
                     acc_subj, acc_obj, acc_phr):         # f32 VMEM accumulators (rows,128)
    F = FEAT_SIZE
    k = pl.program_id(0)

    @pl.when(k == 0)
    def _():
        acc_subj[...] = jnp.zeros_like(acc_subj)
        acc_obj[...] = jnp.zeros_like(acc_obj)
        acc_phr[...] = jnp.zeros_like(acc_phr)

    src = src_ref[...]                                   # (TE, 128) bf16
    tgt = tgt_ref[...]

    # --- four MassageGenerators fused lane-wise (block-diagonal weights) ---
    z = (jnp.dot(src, ws_ref[...], preferred_element_type=jnp.float32)
         + jnp.dot(tgt, wt_ref[...], preferred_element_type=jnp.float32)
         + bg_ref[...])
    z = jnp.maximum(z, 0.0)                              # ReLU of the gate Linear
    sig = pl.reciprocal(1.0 + jnp.exp(-z), approx=True)  # sigmoid via EUP exp + approx recip

    # per-generator mean broadcast back over its 32 lanes: one lane-dense MXU matmul
    gate = jnp.dot(sig.astype(jnp.bfloat16), gavg_ref[...],
                   preferred_element_type=jnp.float32)   # (TE, 128)
    msg = (src * gate.astype(jnp.bfloat16))              # (TE, 128) bf16, lane blocks [ps|po|op|sp]

    # --- segment mean + zero-padded scatter + /2 (folded into A); lane-dense contractions ---
    acc_subj[...] += jnp.dot(a_subj_ref[...], msg, preferred_element_type=jnp.float32)
    acc_obj[...] += jnp.dot(a_obj_ref[...], msg, preferred_element_type=jnp.float32)
    acc_phr[...] += jnp.dot(a_phr_ref[...], msg, preferred_element_type=jnp.float32)

    # --- epilogue: MassageApply on the accumulated node summaries ---
    @pl.when(k == pl.num_programs(0) - 1)
    def _():
        summ_i = acc_subj[:, 0:F] + acc_obj[:, F:2 * F]           # (Ni, F) f32
        summ_p = acc_phr[:, 2 * F:3 * F] + acc_phr[:, 3 * F:4 * F]

        hi = jnp.maximum(
            jnp.dot(summ_i.astype(jnp.bfloat16), wi1_ref[...],
                    preferred_element_type=jnp.float32)
            + jnp.dot(inst_ref[...], wi2_ref[...], preferred_element_type=jnp.float32)
            + bi_ref[...], 0.0)                                    # (Ni, 2F)
        inst_out_ref[...] = summ_i + hi[:, 0:F] + hi[:, F:2 * F]

        hp = jnp.maximum(
            jnp.dot(summ_p.astype(jnp.bfloat16), wp1_ref[...],
                    preferred_element_type=jnp.float32)
            + jnp.dot(phra_ref[...], wp2_ref[...], preferred_element_type=jnp.float32)
            + bp_ref[...], 0.0)                                    # (Np, 2F)
        phra_out_ref[...] = summ_p + hp[:, 0:F] + hp[:, F:2 * F]


def _fixed_spec(shape):
    n = len(shape)
    return pl.BlockSpec(shape, lambda k, _n=n: (0,) * _n)


def _fused_forward_pallas(src, tgt, a_subj, a_obj, a_phr, inst_b, phra_b, packed):
    F = FEAT_SIZE
    ni_pad, ep = a_subj.shape
    np_pad = a_phr.shape[0]
    te = _tile_e(ep)
    n_tiles = ep // te

    statics = (packed['ws'], packed['wt'], packed['bg'], packed['gavg'],
               inst_b, phra_b,
               packed['wi1'], packed['wi2'], packed['bi'],
               packed['wp1'], packed['wp2'], packed['bp'])

    in_specs = [
        pl.BlockSpec((te, LANES), lambda k: (k, 0)),       # src slab tile
        pl.BlockSpec((te, LANES), lambda k: (k, 0)),       # tgt slab tile
        pl.BlockSpec((ni_pad, te), lambda k: (0, k)),      # a_subj tile
        pl.BlockSpec((ni_pad, te), lambda k: (0, k)),      # a_obj tile
        pl.BlockSpec((np_pad, te), lambda k: (0, k)),      # a_phr tile
    ] + [_fixed_spec(a.shape) for a in statics]

    out_specs = (_fixed_spec((ni_pad, F)), _fixed_spec((np_pad, F)))

    return pl.pallas_call(
        _fused_mp_kernel,
        out_shape=(jax.ShapeDtypeStruct((ni_pad, F), jnp.float32),
                   jax.ShapeDtypeStruct((np_pad, F), jnp.float32)),
        grid_spec=pltpu.PrefetchScalarGridSpec(
            num_scalar_prefetch=0,
            grid=(n_tiles,),
            in_specs=in_specs,
            out_specs=out_specs,
            scratch_shapes=[pltpu.VMEM((ni_pad, LANES), jnp.float32),
                            pltpu.VMEM((ni_pad, LANES), jnp.float32),
                            pltpu.VMEM((np_pad, LANES), jnp.float32)]),
        compiler_params=pltpu.CompilerParams(
            dimension_semantics=("arbitrary",),            # reduction over E tiles
            vmem_limit_bytes=32 * 1024 * 1024),
    )(src, tgt, a_subj, a_obj, a_phr, *statics)


@jax.jit
def _device_forward(packed, inst_feat, phra_feat, subj, obj, clu, a_subj, a_obj, a_phr):
    """Gather edge endpoints (bf16), build lane-packed slabs and run the fused kernel."""
    ni, np_ = inst_feat.shape[0], phra_feat.shape[0]
    ni_pad, np_pad = a_subj.shape[0], a_phr.shape[0]
    inst_b = jnp.pad(inst_feat, ((0, ni_pad - ni), (0, 0))).astype(jnp.bfloat16)
    phra_b = jnp.pad(phra_feat, ((0, np_pad - np_), (0, 0))).astype(jnp.bfloat16)

    # Block order along the lane axis: [p_s, p_o, o_p, s_p]
    P = phra_b[clu]      # phrase feature per edge (source of p_s/p_o, target of o_p/s_p)
    S = inst_b[subj]     # subject instance feature per edge
    O = inst_b[obj]      # object instance feature per edge
    src = jnp.concatenate([P, P, O, S], axis=1)            # (Ep, 128) bf16
    tgt = jnp.concatenate([S, O, P, P], axis=1)            # (Ep, 128) bf16

    inst_out, phra_out = _fused_forward_pallas(src, tgt, a_subj, a_obj, a_phr,
                                               inst_b, phra_b, packed)
    return inst_out[:ni], phra_out[:np_]


# ------------------------------ host-side preparation ------------------------------

def pack_params(params):
    """Lane-pack the gate generators block-diagonally + the refiners 64-lanes wide (bf16)."""
    F, D = FEAT_SIZE, GATE_OUT_DIM
    gens = [params[k] for k in ('p_s_gen', 'p_o_gen', 'o_p_gen', 's_p_gen')]
    packed = dict(
        ws=block_diag(*[g['W'][:F] for g in gens]).astype(jnp.bfloat16),   # (4F,4D)
        wt=block_diag(*[g['W'][F:] for g in gens]).astype(jnp.bfloat16),   # (4F,4D)
        bg=jnp.concatenate([g['b'] for g in gens]).reshape(1, NUM_GEN * D).astype(jnp.float32),
        # constant block-averaging matrix: gate_bcast = sigmoid(z) @ gavg
        gavg=jnp.asarray(np.kron(np.eye(NUM_GEN, dtype=np.float32),
                                 np.full((D, F), 1.0 / D, np.float32)),
                         dtype=jnp.bfloat16),
    )
    for tag, name in (('i', 'inst_refiner'), ('p', 'phra_refiner')):
        r = params[name]
        zeros = jnp.zeros((F, F), jnp.float32)
        packed['w%s1' % tag] = jnp.concatenate([r['W1'], zeros], axis=1).astype(jnp.bfloat16)  # [W1|0]
        packed['w%s2' % tag] = jnp.concatenate([zeros, r['W2']], axis=1).astype(jnp.bfloat16)  # [0|W2]
        packed['b%s' % tag] = jnp.concatenate([r['b1'], r['b2']]).reshape(1, 2 * F).astype(jnp.float32)
    return packed


def preprocess_image(conn_mat, clu_idx, n_inst, n_phra):
    """Host-side (numpy) index arrays + padded averaging/scatter matrices (bf16)."""
    conn = np.asarray(conn_mat)
    if conn.shape[0] != 2:          # PyTorch calls .transpose without assignment (no-op); be safe here
        conn = conn.T
    clu = np.asarray(clu_idx).astype(np.int32)
    subj = conn[0].astype(np.int32)
    obj = conn[1].astype(np.int32)
    E = conn.shape[1]
    ep = _round_up(max(E, 1), 128)
    ni_pad = _round_up(n_inst, ROW_PAD)
    np_pad = _round_up(n_phra, ROW_PAD)
    # TODO(synk): duplicate (subject, object) pairs are deduplicated by the PyTorch connection
    # marker; here every edge is used (identical result when pairs are unique).

    def node_mean(labels, n_rows):
        # A[r, e] = 1/deg(r) if labels[e] == r else 0; rows without edges stay zero,
        # matching the zero-padded message in FeatureRefiner.
        A = np.zeros((n_rows, ep), np.float32)
        for r in np.unique(labels):
            hits = np.nonzero(labels == r)[0]
            A[int(r), hits] = 1.0 / len(hits)
        return A

    def cluster_mean(labels, n_rows):
        # Mirrors MessagePassing.summarize_message: compares against the loop index i
        # (not exist[i]) and drops singleton clusters (the 0-dim `.squeeze()` branch).
        # TODO(synk): zero-member / singleton cluster ids are left as zero rows here
        # instead of the NaN / stacked-singleton the PyTorch path would produce.
        A = np.zeros((n_rows, ep), np.float32)
        exist = np.unique(labels)
        for i in range(len(exist)):
            hits = np.nonzero(labels == i)[0]
            if len(hits) >= 2:
                A[i, hits] = 1.0 / len(hits)
        return A

    # /2 of the 'mean' apply method folded into the matrices
    a_subj = 0.5 * node_mean(subj, ni_pad)     # phrase -> subject messages (lane block 0)
    a_obj = 0.5 * node_mean(obj, ni_pad)       # phrase -> object  messages (lane block 1)
    a_phr = 0.5 * cluster_mean(clu, np_pad)    # obj/subj -> phrase messages (lane blocks 2,3)

    pad = ep - E
    subj_p = np.pad(subj, (0, pad))            # padded edges gather row 0; their A columns are 0
    obj_p = np.pad(obj, (0, pad))
    clu_p = np.pad(clu, (0, pad))
    return (jnp.asarray(subj_p), jnp.asarray(obj_p), jnp.asarray(clu_p),
            jnp.asarray(a_subj, dtype=jnp.bfloat16),
            jnp.asarray(a_obj, dtype=jnp.bfloat16),
            jnp.asarray(a_phr, dtype=jnp.bfloat16))


def message_passing_forward(params, instance_feats, phrase_feats,
                            connect_mats, phrase_clustered_indexs):
    packed = pack_params(params)
    refined_inst, refined_phra = [], []
    # TODO(synk): bucket-pad (Ni, Np, E), stack images and add a leading 'parallel'
    # grid axis (PrefetchScalarGridSpec with per-image offsets) to amortize dispatch /
    # recompile overhead and use both v7x TensorCores; kept per-image here.
    for inst_feat, phra_feat, conn_mat, clu_idx in zip(
            instance_feats, phrase_feats, connect_mats, phrase_clustered_indexs):
        pre = preprocess_image(conn_mat, clu_idx, inst_feat.shape[0], phra_feat.shape[0])
        inst_out, phra_out = _device_forward(packed, inst_feat, phra_feat, *pre)
        refined_inst.append(inst_out)
        refined_phra.append(phra_out)
    return refined_inst, refined_phra


# ------------------------------ plain-JAX reference ------------------------------

def reference_forward(params, inst_feat, phra_feat, conn_mat, clu_idx):
    """Straightforward f32 jnp mirror of the PyTorch MessagePassing forward (MSG_APPLY == 'mean')."""
    conn = np.asarray(conn_mat)
    if conn.shape[0] != 2:
        conn = conn.T
    clu = np.asarray(clu_idx)
    subj, obj = conn[0], conn[1]
    n_inst, n_phra = inst_feat.shape[0], phra_feat.shape[0]
    E = conn.shape[1]

    def gate_msg(gen, src, tgt):
        z = jnp.maximum(jnp.concatenate([src, tgt], axis=1) @ gen['W'] + gen['b'], 0.0)
        g = jnp.mean(1.0 / (1.0 + jnp.exp(-z)), axis=1, keepdims=True)
        return src * g

    def node_avg_matrix(labels, n_rows):
        A = np.zeros((n_rows, E), np.float32)
        for r in np.unique(labels):
            hits = np.nonzero(labels == r)[0]
            A[int(r), hits] = 1.0 / len(hits)
        return jnp.asarray(A)

    def cluster_avg_matrix(labels, n_rows):
        A = np.zeros((n_rows, E), np.float32)
        exist = np.unique(labels)
        for i in range(len(exist)):
            hits = np.nonzero(labels == i)[0]
            if len(hits) >= 2:
                A[i, hits] = 1.0 / len(hits)
        return jnp.asarray(A)

    P, S, O = phra_feat[clu], inst_feat[subj], inst_feat[obj]
    ps = gate_msg(params['p_s_gen'], P, S)
    po = gate_msg(params['p_o_gen'], P, O)
    op = gate_msg(params['o_p_gen'], O, P)
    sp = gate_msg(params['s_p_gen'], S, P)

    summ_i = (node_avg_matrix(obj, n_inst) @ po + node_avg_matrix(subj, n_inst) @ ps) / 2.0
    A_phr = cluster_avg_matrix(clu, n_phra)
    summ_p = (A_phr @ op + A_phr @ sp) / 2.0

    def apply_msg(r, x1, x2):
        return (x1 + jnp.maximum(x1 @ r['W1'] + r['b1'], 0.0)
                + jnp.maximum(x2 @ r['W2'] + r['b2'], 0.0))

    return (apply_msg(params['inst_refiner'], summ_i, inst_feat),
            apply_msg(params['phra_refiner'], summ_p, phra_feat))


# ------------------------------ parameter init ------------------------------

def init_params(key):
    def linear(k, din, dout):
        k1, k2 = jax.random.split(k)
        lim = 1.0 / np.sqrt(din)
        W = jax.random.uniform(k1, (din, dout), jnp.float32, -lim, lim)
        b = jax.random.uniform(k2, (dout,), jnp.float32, -lim, lim)
        return W, b

    keys = jax.random.split(key, 8)
    params = {}
    for name, k in zip(['p_s_gen', 's_p_gen', 'p_o_gen', 'o_p_gen'], keys[:4]):
        W, b = linear(k, 2 * FEAT_SIZE, GATE_OUT_DIM)
        params[name] = {'W': W, 'b': b}
    for name, k in zip(['inst_refiner', 'phra_refiner'], keys[4:6]):
        k1, k2 = jax.random.split(k)
        W1, b1 = linear(k1, FEAT_SIZE, FEAT_SIZE)
        W2, b2 = linear(k2, FEAT_SIZE, FEAT_SIZE)
        params[name] = {'W1': W1, 'b1': b1, 'W2': W2, 'b2': b2}
    return params


# ----------------------------------- main ------------------------------------

if __name__ == "__main__":
    key = jax.random.PRNGKey(0)
    k_params, k_i1, k_p1, k_i2, k_p2 = jax.random.split(key, 5)
    params = init_params(k_params)

    # image 1: tiny scene graph
    inst1 = jax.random.normal(k_i1, (6, FEAT_SIZE), jnp.float32)
    phra1 = jax.random.normal(k_p1, (4, FEAT_SIZE), jnp.float32)
    conn1 = np.array([[0, 1, 2, 3, 0, 1, 2, 4],
                      [1, 2, 3, 4, 5, 0, 5, 2]], dtype=np.int64)   # (2, pairs)
    clu1 = np.array([0, 0, 1, 1, 2, 2, 3, 3], dtype=np.int64)

    # image 2: larger graph with unique (subj, obj) pairs -> exercises row padding
    # and the multi-tile E accumulation path (Ep = 256, two grid steps)
    NI2, NP2, E2 = 12, 7, 140
    rng = np.random.RandomState(0)
    pair_ids = rng.permutation(NI2 * NI2)[:E2]
    inst2 = jax.random.normal(k_i2, (NI2, FEAT_SIZE), jnp.float32)
    phra2 = jax.random.normal(k_p2, (NP2, FEAT_SIZE), jnp.float32)
    conn2 = np.stack([pair_ids // NI2, pair_ids % NI2]).astype(np.int64)
    clu2 = (np.arange(E2) % NP2).astype(np.int64)   # contiguous ids, every cluster >= 2 edges

    insts, phras, conns, clus = [inst1, inst2], [phra1, phra2], [conn1, conn2], [clu1, clu2]
    refined_inst, refined_phra = message_passing_forward(params, insts, phras, conns, clus)
    for a in refined_inst + refined_phra:
        jax.block_until_ready(a)

    # sanity check against a plain-JAX f32 reference; tolerance covers the bf16
    # operands / approx-reciprocal sigmoid used on the TPU path (f32 accumulation).
    for idx in range(len(insts)):
        ref_i, ref_p = reference_forward(params, insts[idx], phras[idx], conns[idx], clus[idx])
        np.testing.assert_allclose(np.asarray(refined_inst[idx]), np.asarray(ref_i),
                                   rtol=2e-2, atol=2e-2)
        np.testing.assert_allclose(np.asarray(refined_phra[idx]), np.asarray(ref_p),
                                   rtol=2e-2, atol=2e-2)

    print("KERNEL_OK")
</pallas_src>

<mosaic_0001>
module attributes {stable_mosaic.version = 11 : i64} {
  func.func @_fused_mp_kernel(%arg0: i32, %arg1: memref<128x128xbf16, #tpu.memory_space<vmem>>, %arg2: memref<128x128xbf16, #tpu.memory_space<vmem>>, %arg3: memref<16x128xbf16, #tpu.memory_space<vmem>>, %arg4: memref<16x128xbf16, #tpu.memory_space<vmem>>, %arg5: memref<16x128xbf16, #tpu.memory_space<vmem>>, %arg6: memref<128x128xbf16, #tpu.memory_space<vmem>>, %arg7: memref<128x128xbf16, #tpu.memory_space<vmem>>, %arg8: memref<1x128xf32, #tpu.memory_space<vmem>>, %arg9: memref<128x128xbf16, #tpu.memory_space<vmem>>, %arg10: memref<16x32xbf16, #tpu.memory_space<vmem>>, %arg11: memref<16x32xbf16, #tpu.memory_space<vmem>>, %arg12: memref<32x64xbf16, #tpu.memory_space<vmem>>, %arg13: memref<32x64xbf16, #tpu.memory_space<vmem>>, %arg14: memref<1x64xf32, #tpu.memory_space<vmem>>, %arg15: memref<32x64xbf16, #tpu.memory_space<vmem>>, %arg16: memref<32x64xbf16, #tpu.memory_space<vmem>>, %arg17: memref<1x64xf32, #tpu.memory_space<vmem>>, %arg18: memref<16x32xf32, #tpu.memory_space<vmem>>, %arg19: memref<16x32xf32, #tpu.memory_space<vmem>>, %arg20: memref<16x128xf32, #tpu.memory_space<vmem>>, %arg21: memref<16x128xf32, #tpu.memory_space<vmem>>, %arg22: memref<16x128xf32, #tpu.memory_space<vmem>>) attributes {dimension_semantics = [#tpu.dimension_semantics<arbitrary>], iteration_bounds = array<i64: 1>, scalar_prefetch = 0 : i64, scratch_operands = 3 : i64, tpu.core_type = #tpu.core_type<tc>, window_params = [{transform_indices = @transform_0, window_bounds = array<i64: 128, 128>}, {transform_indices = @transform_1, window_bounds = array<i64: 128, 128>}, {transform_indices = @transform_2, window_bounds = array<i64: 16, 128>}, {transform_indices = @transform_3, window_bounds = array<i64: 16, 128>}, {transform_indices = @transform_4, window_bounds = array<i64: 16, 128>}, {pipeline_mode = #tpu.pipeline_mode<synchronous>, transform_indices = @transform_5, window_bounds = array<i64: 128, 128>}, {pipeline_mode = #tpu.pipeline_mode<synchronous>, transform_indices = @transform_6, window_bounds = array<i64: 128, 128>}, {pipeline_mode = #tpu.pipeline_mode<synchronous>, transform_indices = @transform_7, window_bounds = array<i64: 1, 128>}, {pipeline_mode = #tpu.pipeline_mode<synchronous>, transform_indices = @transform_8, window_bounds = array<i64: 128, 128>}, {pipeline_mode = #tpu.pipeline_mode<synchronous>, transform_indices = @transform_9, window_bounds = array<i64: 16, 32>}, {pipeline_mode = #tpu.pipeline_mode<synchronous>, transform_indices = @transform_10, window_bounds = array<i64: 16, 32>}, {pipeline_mode = #tpu.pipeline_mode<synchronous>, transform_indices = @transform_11, window_bounds = array<i64: 32, 64>}, {pipeline_mode = #tpu.pipeline_mode<synchronous>, transform_indices = @transform_12, window_bounds = array<i64: 32, 64>}, {pipeline_mode = #tpu.pipeline_mode<synchronous>, transform_indices = @transform_13, window_bounds = array<i64: 1, 64>}, {pipeline_mode = #tpu.pipeline_mode<synchronous>, transform_indices = @transform_14, window_bounds = array<i64: 32, 64>}, {pipeline_mode = #tpu.pipeline_mode<synchronous>, transform_indices = @transform_15, window_bounds = array<i64: 32, 64>}, {pipeline_mode = #tpu.pipeline_mode<synchronous>, transform_indices = @transform_16, window_bounds = array<i64: 1, 64>}, {pipeline_mode = #tpu.pipeline_mode<synchronous>, transform_indices = @transform_17, window_bounds = array<i64: 16, 32>}, {pipeline_mode = #tpu.pipeline_mode<synchronous>, transform_indices = @transform_18, window_bounds = array<i64: 16, 32>}]} {
    %c0_i32 = arith.constant 0 : i32
    %0 = arith.cmpi eq, %arg0, %c0_i32 : i32
    %1 = arith.extui %0 : i1 to i32
    %c0_i32_0 = arith.constant 0 : i32
    %2 = arith.cmpi ne, %1, %c0_i32_0 : i32
    scf.if %2 {
      %cst_40 = arith.constant 0.000000e+00 : f32
      %44 = vector.broadcast %cst_40 : f32 to vector<16x128xf32>
      %c0_41 = arith.constant 0 : index
      %c0_42 = arith.constant 0 : index
      %45 = vector.load %arg20[%c0_41, %c0_42] : memref<16x128xf32, #tpu.memory_space<vmem>>, vector<16x128xf32>
      tpu.vector_store %arg20[%c0_41, %c0_42], %44 {strides = array<i32>} : memref<16x128xf32, #tpu.memory_space<vmem>>, vector<16x128xf32>,
      %cst_43 = arith.constant 0.000000e+00 : f32
      %46 = vector.broadcast %cst_43 : f32 to vector<16x128xf32>
      %c0_44 = arith.constant 0 : index
      %c0_45 = arith.constant 0 : index
      %47 = vector.load %arg21[%c0_44, %c0_45] : memref<16x128xf32, #tpu.memory_space<vmem>>, vector<16x128xf32>
      tpu.vector_store %arg21[%c0_44, %c0_45], %46 {strides = array<i32>} : memref<16x128xf32, #tpu.memory_space<vmem>>, vector<16x128xf32>,
      %cst_46 = arith.constant 0.000000e+00 : f32
      %48 = vector.broadcast %cst_46 : f32 to vector<16x128xf32>
      %c0_47 = arith.constant 0 : index
      %c0_48 = arith.constant 0 : index
      %49 = vector.load %arg22[%c0_47, %c0_48] : memref<16x128xf32, #tpu.memory_space<vmem>>, vector<16x128xf32>
      tpu.vector_store %arg22[%c0_47, %c0_48], %48 {strides = array<i32>} : memref<16x128xf32, #tpu.memory_space<vmem>>, vector<16x128xf32>,
    } else {
    }
    %c0 = arith.constant 0 : index
    %c0_1 = arith.constant 0 : index
    %3 = vector.load %arg1[%c0, %c0_1] : memref<128x128xbf16, #tpu.memory_space<vmem>>, vector<128x128xbf16>
    %c0_2 = arith.constant 0 : index
    %c0_3 = arith.constant 0 : index
    %4 = vector.load %arg2[%c0_2, %c0_3] : memref<128x128xbf16, #tpu.memory_space<vmem>>, vector<128x128xbf16>
    %c0_4 = arith.constant 0 : index
    %c0_5 = arith.constant 0 : index
    %5 = vector.load %arg6[%c0_4, %c0_5] : memref<128x128xbf16, #tpu.memory_space<vmem>>, vector<128x128xbf16>
    %cst = arith.constant dense<0.000000e+00> : vector<128x128xf32>
    %6 = tpu.matmul %3, %5, %cst {dimension_numbers = #tpu.dot_dimension_numbers<[1], [0], [0], [1], [0, 0, 1, 1], [], []>} : vector<128x128xbf16>, vector<128x128xbf16>, vector<128x128xf32> -> vector<128x128xf32>
    %c0_6 = arith.constant 0 : index
    %c0_7 = arith.constant 0 : index
    %7 = vector.load %arg7[%c0_6, %c0_7] : memref<128x128xbf16, #tpu.memory_space<vmem>>, vector<128x128xbf16>
    %cst_8 = arith.constant dense<0.000000e+00> : vector<128x128xf32>
    %8 = tpu.matmul %4, %7, %cst_8 {dimension_numbers = #tpu.dot_dimension_numbers<[1], [0], [0], [1], [0, 0, 1, 1], [], []>} : vector<128x128xbf16>, vector<128x128xbf16>, vector<128x128xf32> -> vector<128x128xf32>
    %9 = arith.addf %6, %8 : vector<128x128xf32>
    %c0_9 = arith.constant 0 : index
    %c0_10 = arith.constant 0 : index
    %10 = vector.load %arg8[%c0_9, %c0_10] : memref<1x128xf32, #tpu.memory_space<vmem>>, vector<1x128xf32>
    %11 = vector.broadcast %10 : vector<1x128xf32> to vector<128x128xf32>
    %12 = arith.addf %9, %11 : vector<128x128xf32>
    %cst_11 = arith.constant 0.000000e+00 : f32
    %13 = vector.broadcast %cst_11 : f32 to vector<128x128xf32>
    %14 = arith.maximumf %12, %13 : vector<128x128xf32>
    %cst_12 = arith.constant 0.000000e+00 : f32
    %15 = vector.broadcast %cst_12 : f32 to vector<128x128xf32>
    %16 = arith.subf %15, %14 : vector<128x128xf32>
    %17 = math.exp %16 : vector<128x128xf32>
    %cst_13 = arith.constant 1.000000e+00 : f32
    %18 = vector.broadcast %cst_13 : f32 to vector<128x128xf32>
    %19 = arith.addf %18, %17 : vector<128x128xf32>
    %20 = tpu.reciprocal %19 {approx = true} : vector<128x128xf32> -> vector<128x128xf32>
    %21 = arith.truncf %20 : vector<128x128xf32> to vector<128x128xbf16>
    %c0_14 = arith.constant 0 : index
    %c0_15 = arith.constant 0 : index
    %22 = vector.load %arg9[%c0_14, %c0_15] : memref<128x128xbf16, #tpu.memory_space<vmem>>, vector<128x128xbf16>
    %cst_16 = arith.constant dense<0.000000e+00> : vector<128x128xf32>
    %23 = tpu.matmul %21, %22, %cst_16 {dimension_numbers = #tpu.dot_dimension_numbers<[1], [0], [0], [1], [0, 0, 1, 1], [], []>} : vector<128x128xbf16>, vector<128x128xbf16>, vector<128x128xf32> -> vector<128x128xf32>
    %24 = arith.truncf %23 : vector<128x128xf32> to vector<128x128xbf16>
    %25 = arith.mulf %3, %24 : vector<128x128xbf16>
    %c0_17 = arith.constant 0 : index
    %c0_18 = arith.constant 0 : index
    %26 = vector.load %arg20[%c0_17, %c0_18] : memref<16x128xf32, #tpu.memory_space<vmem>>, vector<16x128xf32>
    %c0_19 = arith.constant 0 : index
    %c0_20 = arith.constant 0 : index
    %27 = vector.load %arg3[%c0_19, %c0_20] : memref<16x128xbf16, #tpu.memory_space<vmem>>, vector<16x128xbf16>
    %cst_21 = arith.constant dense<0.000000e+00> : vector<16x128xf32>
    %28 = tpu.matmul %27, %25, %cst_21 {dimension_numbers = #tpu.dot_dimension_numbers<[1], [0], [0], [1], [0, 0, 1, 1], [], []>} : vector<16x128xbf16>, vector<128x128xbf16>, vector<16x128xf32> -> vector<16x128xf32>
    %29 = arith.addf %26, %28 : vector<16x128xf32>
    %c0_22 = arith.constant 0 : index
    %c0_23 = arith.constant 0 : index
    %30 = vector.load %arg20[%c0_22, %c0_23] : memref<16x128xf32, #tpu.memory_space<vmem>>, vector<16x128xf32>
    tpu.vector_store %arg20[%c0_22, %c0_23], %29 {strides = array<i32>} : memref<16x128xf32, #tpu.memory_space<vmem>>, vector<16x128xf32>,
    %c0_24 = arith.constant 0 : index
    %c0_25 = arith.constant 0 : index
    %31 = vector.load %arg21[%c0_24, %c0_25] : memref<16x128xf32, #tpu.memory_space<vmem>>, vector<16x128xf32>
    %c0_26 = arith.constant 0 : index
    %c0_27 = arith.constant 0 : index
    %32 = vector.load %arg4[%c0_26, %c0_27] : memref<16x128xbf16, #tpu.memory_space<vmem>>, vector<16x128xbf16>
    %cst_28 = arith.constant dense<0.000000e+00> : vector<16x128xf32>
    %33 = tpu.matmul %32, %25, %cst_28 {dimension_numbers = #tpu.dot_dimension_numbers<[1], [0], [0], [1], [0, 0, 1, 1], [], []>} : vector<16x128xbf16>, vector<128x128xbf16>, vector<16x128xf32> -> vector<16x128xf32>
    %34 = arith.addf %31, %33 : vector<16x128xf32>
    %c0_29 = arith.constant 0 : index
    %c0_30 = arith.constant 0 : index
    %35 = vector.load %arg21[%c0_29, %c0_30] : memref<16x128xf32, #tpu.memory_space<vmem>>, vector<16x128xf32>
    tpu.vector_store %arg21[%c0_29, %c0_30], %34 {strides = array<i32>} : memref<16x128xf32, #tpu.memory_space<vmem>>, vector<16x128xf32>,
    %c0_31 = arith.constant 0 : index
    %c0_32 = arith.constant 0 : index
    %36 = vector.load %arg22[%c0_31, %c0_32] : memref<16x128xf32, #tpu.memory_space<vmem>>, vector<16x128xf32>
    %c0_33 = arith.constant 0 : index
    %c0_34 = arith.constant 0 : index
    %37 = vector.load %arg5[%c0_33, %c0_34] : memref<16x128xbf16, #tpu.memory_space<vmem>>, vector<16x128xbf16>
    %cst_35 = arith.constant dense<0.000000e+00> : vector<16x128xf32>
    %38 = tpu.matmul %37, %25, %cst_35 {dimension_numbers = #tpu.dot_dimension_numbers<[1], [0], [0], [1], [0, 0, 1, 1], [], []>} : vector<16x128xbf16>, vector<128x128xbf16>, vector<16x128xf32> -> vector<16x128xf32>
    %39 = arith.addf %36, %38 : vector<16x128xf32>
    %c0_36 = arith.constant 0 : index
    %c0_37 = arith.constant 0 : index
    %40 = vector.load %arg22[%c0_36, %c0_37] : memref<16x128xf32, #tpu.memory_space<vmem>>, vector<16x128xf32>
    tpu.vector_store %arg22[%c0_36, %c0_37], %39 {strides = array<i32>} : memref<16x128xf32, #tpu.memory_space<vmem>>, vector<16x128xf32>,
    %c0_i32_38 = arith.constant 0 : i32
    %41 = arith.cmpi eq, %arg0, %c0_i32_38 : i32
    %42 = arith.extui %41 : i1 to i32
    %c0_i32_39 = arith.constant 0 : i32
    %43 = arith.cmpi ne, %42, %c0_i32_39 : i32
    scf.if %43 {
      %c0_40 = arith.constant 0 : index
      %c0_41 = arith.constant 0 : index
      %44 = vector.load %arg20[%c0_40, %c0_41] : memref<16x128xf32, #tpu.memory_space<vmem>>, vector<16x32xf32>
      %c0_42 = arith.constant 0 : index
      %c32 = arith.constant 32 : index
      %45 = vector.load %arg21[%c0_42, %c32] : memref<16x128xf32, #tpu.memory_space<vmem>>, vector<16x32xf32>
      %46 = arith.addf %44, %45 : vector<16x32xf32>
      %c0_43 = arith.constant 0 : index
      %c64 = arith.constant 64 : index
      %47 = vector.load %arg22[%c0_43, %c64] : memref<16x128xf32, #tpu.memory_space<vmem>>, vector<16x32xf32>
      %c0_44 = arith.constant 0 : index
      %c96 = arith.constant 96 : index
      %48 = vector.load %arg22[%c0_44, %c96] : memref<16x128xf32, #tpu.memory_space<vmem>>, vector<16x32xf32>
      %49 = arith.addf %47, %48 : vector<16x32xf32>
      %50 = arith.truncf %46 : vector<16x32xf32> to vector<16x32xbf16>
      %c0_45 = arith.constant 0 : index
      %c0_46 = arith.constant 0 : index
      %51 = vector.load %arg12[%c0_45, %c0_46] : memref<32x64xbf16, #tpu.memory_space<vmem>>, vector<32x64xbf16>
      %cst_47 = arith.constant dense<0.000000e+00> : vector<16x64xf32>
      %52 = tpu.matmul %50, %51, %cst_47 {dimension_numbers = #tpu.dot_dimension_numbers<[1], [0], [0], [1], [0, 0, 1, 1], [], []>} : vector<16x32xbf16>, vector<32x64xbf16>, vector<16x64xf32> -> vector<16x64xf32>
      %c0_48 = arith.constant 0 : index
      %c0_49 = arith.constant 0 : index
      %53 = vector.load %arg10[%c0_48, %c0_49] : memref<16x32xbf16, #tpu.memory_space<vmem>>, vector<16x32xbf16>
      %c0_50 = arith.constant 0 : index
      %c0_51 = arith.constant 0 : index
      %54 = vector.load %arg13[%c0_50, %c0_51] : memref<32x64xbf16, #tpu.memory_space<vmem>>, vector<32x64xbf16>
      %cst_52 = arith.constant dense<0.000000e+00> : vector<16x64xf32>
      %55 = tpu.matmul %53, %54, %cst_52 {dimension_numbers = #tpu.dot_dimension_numbers<[1], [0], [0], [1], [0, 0, 1, 1], [], []>} : vector<16x32xbf16>, vector<32x64xbf16>, vector<16x64xf32> -> vector<16x64xf32>
      %56 = arith.addf %52, %55 : vector<16x64xf32>
      %c0_53 = arith.constant 0 : index
      %c0_54 = arith.constant 0 : index
      %57 = vector.load %arg14[%c0_53, %c0_54] : memref<1x64xf32, #tpu.memory_space<vmem>>, vector<1x64xf32>
      %58 = vector.broadcast %57 : vector<1x64xf32> to vector<16x64xf32>
      %59 = arith.addf %56, %58 : vector<16x64xf32>
      %cst_55 = arith.constant 0.000000e+00 : f32
      %60 = vector.broadcast %cst_55 : f32 to vector<16x64xf32>
      %61 = arith.maximumf %59, %60 : vector<16x64xf32>
      %62 = vector.extract_strided_slice %61 {offsets = [0, 0], sizes = [16, 32], strides = [1, 1]} : vector<16x64xf32> to vector<16x32xf32>
      %63 = arith.addf %46, %62 : vector<16x32xf32>
      %64 = vector.extract_strided_slice %61 {offsets = [0, 32], sizes = [16, 32], strides = [1, 1]} : vector<16x64xf32> to vector<16x32xf32>
      %65 = arith.addf %63, %64 : vector<16x32xf32>
      %c0_56 = arith.constant 0 : index
      %c0_57 = arith.constant 0 : index
      %66 = vector.load %arg18[%c0_56, %c0_57] : memref<16x32xf32, #tpu.memory_space<vmem>>, vector<16x32xf32>
      tpu.vector_store %arg18[%c0_56, %c0_57], %65 {strides = array<i32>} : memref<16x32xf32, #tpu.memory_space<vmem>>, vector<16x32xf32>,
      %67 = arith.truncf %49 : vector<16x32xf32> to vector<16x32xbf16>
      %c0_58 = arith.constant 0 : index
      %c0_59 = arith.constant 0 : index
      %68 = vector.load %arg15[%c0_58, %c0_59] : memref<32x64xbf16, #tpu.memory_space<vmem>>, vector<32x64xbf16>
      %cst_60 = arith.constant dense<0.000000e+00> : vector<16x64xf32>
      %69 = tpu.matmul %67, %68, %cst_60 {dimension_numbers = #tpu.dot_dimension_numbers<[1], [0], [0], [1], [0, 0, 1, 1], [], []>} : vector<16x32xbf16>, vector<32x64xbf16>, vector<16x64xf32> -> vector<16x64xf32>
      %c0_61 = arith.constant 0 : index
      %c0_62 = arith.constant 0 : index
      %70 = vector.load %arg11[%c0_61, %c0_62] : memref<16x32xbf16, #tpu.memory_space<vmem>>, vector<16x32xbf16>
      %c0_63 = arith.constant 0 : index
      %c0_64 = arith.constant 0 : index
      %71 = vector.load %arg16[%c0_63, %c0_64] : memref<32x64xbf16, #tpu.memory_space<vmem>>, vector<32x64xbf16>
      %cst_65 = arith.constant dense<0.000000e+00> : vector<16x64xf32>
      %72 = tpu.matmul %70, %71, %cst_65 {dimension_numbers = #tpu.dot_dimension_numbers<[1], [0], [0], [1], [0, 0, 1, 1], [], []>} : vector<16x32xbf16>, vector<32x64xbf16>, vector<16x64xf32> -> vector<16x64xf32>
      %73 = arith.addf %69, %72 : vector<16x64xf32>
      %c0_66 = arith.constant 0 : index
      %c0_67 = arith.constant 0 : index
      %74 = vector.load %arg17[%c0_66, %c0_67] : memref<1x64xf32, #tpu.memory_space<vmem>>, vector<1x64xf32>
      %75 = vector.broadcast %74 : vector<1x64xf32> to vector<16x64xf32>
      %76 = arith.addf %73, %75 : vector<16x64xf32>
      %cst_68 = arith.constant 0.000000e+00 : f32
      %77 = vector.broadcast %cst_68 : f32 to vector<16x64xf32>
      %78 = arith.maximumf %76, %77 : vector<16x64xf32>
      %79 = vector.extract_strided_slice %78 {offsets = [0, 0], sizes = [16, 32], strides = [1, 1]} : vector<16x64xf32> to vector<16x32xf32>
      %80 = arith.addf %49, %79 : vector<16x32xf32>
      %81 = vector.extract_strided_slice %78 {offsets = [0, 32], sizes = [16, 32], strides = [1, 1]} : vector<16x64xf32> to vector<16x32xf32>
      %82 = arith.addf %80, %81 : vector<16x32xf32>
      %c0_69 = arith.constant 0 : index
      %c0_70 = arith.constant 0 : index
      %83 = vector.load %arg19[%c0_69, %c0_70] : memref<16x32xf32, #tpu.memory_space<vmem>>, vector<16x32xf32>
      tpu.vector_store %arg19[%c0_69, %c0_70], %82 {strides = array<i32>} : memref<16x32xf32, #tpu.memory_space<vmem>>, vector<16x32xf32>,
    } else {
    }
    return
  }
  func.func @transform_0(%arg0: i32) -> (i32, i32) {
    %c0_i32 = arith.constant 0 : i32
    %c0_i32_0 = arith.constant 0 : i32
    return %arg0, %c0_i32 : i32, i32
  }
  func.func @transform_1(%arg0: i32) -> (i32, i32) {
    %c0_i32 = arith.constant 0 : i32
    %c0_i32_0 = arith.constant 0 : i32
    return %arg0, %c0_i32 : i32, i32
  }
  func.func @transform_2(%arg0: i32) -> (i32, i32) {
    %c0_i32 = arith.constant 0 : i32
    %c0_i32_0 = arith.constant 0 : i32
    return %c0_i32, %arg0 : i32, i32
  }
  func.func @transform_3(%arg0: i32) -> (i32, i32) {
    %c0_i32 = arith.constant 0 : i32
    %c0_i32_0 = arith.constant 0 : i32
    return %c0_i32, %arg0 : i32, i32
  }
  func.func @transform_4(%arg0: i32) -> (i32, i32) {
    %c0_i32 = arith.constant 0 : i32
    %c0_i32_0 = arith.constant 0 : i32
    return %c0_i32, %arg0 : i32, i32
  }
  func.func @transform_5(%arg0: i32) -> (i32, i32) {
    %c0_i32 = arith.constant 0 : i32
    %c0_i32_0 = arith.constant 0 : i32
    %c0_i32_1 = arith.constant 0 : i32
    return %c0_i32, %c0_i32_0 : i32, i32
  }
  func.func @transform_6(%arg0: i32) -> (i32, i32) {
    %c0_i32 = arith.constant 0 : i32
    %c0_i32_0 = arith.constant 0 : i32
    %c0_i32_1 = arith.constant 0 : i32
    return %c0_i32, %c0_i32_0 : i32, i32
  }
  func.func @transform_7(%arg0: i32) -> (i32, i32) {
    %c0_i32 = arith.constant 0 : i32
    %c0_i32_0 = arith.constant 0 : i32
    %c0_i32_1 = arith.constant 0 : i32
    return %c0_i32, %c0_i32_0 : i32, i32
  }
  func.func @transform_8(%arg0: i32) -> (i32, i32) {
    %c0_i32 = arith.constant 0 : i32
    %c0_i32_0 = arith.constant 0 : i32
    %c0_i32_1 = arith.constant 0 : i32
    return %c0_i32, %c0_i32_0 : i32, i32
  }
  func.func @transform_9(%arg0: i32) -> (i32, i32) {
    %c0_i32 = arith.constant 0 : i32
    %c0_i32_0 = arith.constant 0 : i32
    %c0_i32_1 = arith.constant 0 : i32
    return %c0_i32, %c0_i32_0 : i32, i32
  }
  func.func @transform_10(%arg0: i32) -> (i32, i32) {
    %c0_i32 = arith.constant 0 : i32
    %c0_i32_0 = arith.constant 0 : i32
    %c0_i32_1 = arith.constant 0 : i32
    return %c0_i32, %c0_i32_0 : i32, i32
  }
  func.func @transform_11(%arg0: i32) -> (i32, i32) {
    %c0_i32 = arith.constant 0 : i32
    %c0_i32_0 = arith.constant 0 : i32
    %c0_i32_1 = arith.constant 0 : i32
    return %c0_i32, %c0_i32_0 : i32, i32
  }
  func.func @transform_12(%arg0: i32) -> (i32, i32) {
    %c0_i32 = arith.constant 0 : i32
    %c0_i32_0 = arith.constant 0 : i32
    %c0_i32_1 = arith.constant 0 : i32
    return %c0_i32, %c0_i32_0 : i32, i32
  }
  func.func @transform_13(%arg0: i32) -> (i32, i32) {
    %c0_i32 = arith.constant 0 : i32
    %c0_i32_0 = arith.constant 0 : i32
    %c0_i32_1 = arith.constant 0 : i32
    return %c0_i32, %c0_i32_0 : i32, i32
  }
  func.func @transform_14(%arg0: i32) -> (i32, i32) {
    %c0_i32 = arith.constant 0 : i32
    %c0_i32_0 = arith.constant 0 : i32
    %c0_i32_1 = arith.constant 0 : i32
    return %c0_i32, %c0_i32_0 : i32, i32
  }
  func.func @transform_15(%arg0: i32) -> (i32, i32) {
    %c0_i32 = arith.constant 0 : i32
    %c0_i32_0 = arith.constant 0 : i32
    %c0_i32_1 = arith.constant 0 : i32
    return %c0_i32, %c0_i32_0 : i32, i32
  }
  func.func @transform_16(%arg0: i32) -> (i32, i32) {
    %c0_i32 = arith.constant 0 : i32
    %c0_i32_0 = arith.constant 0 : i32
    %c0_i32_1 = arith.constant 0 : i32
    return %c0_i32, %c0_i32_0 : i32, i32
  }
  func.func @transform_17(%arg0: i32) -> (i32, i32) {
    %c0_i32 = arith.constant 0 : i32
    %c0_i32_0 = arith.constant 0 : i32
    %c0_i32_1 = arith.constant 0 : i32
    return %c0_i32, %c0_i32_0 : i32, i32
  }
  func.func @transform_18(%arg0: i32) -> (i32, i32) {
    %c0_i32 = arith.constant 0 : i32
    %c0_i32_0 = arith.constant 0 : i32
    %c0_i32_1 = arith.constant 0 : i32
    return %c0_i32, %c0_i32_0 : i32, i32
  }
}

</mosaic_0001>

<llo_original>
// kernel: _device_forward.1
$region0: #{_device_forward.1}
  #allocation0 [shape = 'u32[]', space=smem, size = 0x4, offset = 0x4, fixed_abs, tag = 'smem constant byte address 0x4 - core index']
  #allocation1 [shape = 'u32[72,128]{1,0:T(1,128)}', space=vmem, size = 0x9000, scoped, tag = 'internal scratch']
  #allocation2 [shape = 'f32[16,128]{1,0:T(8,128)}', space=vmem, size = 0x2000, scoped, tag = 'scratch operand']
  #allocation3 [shape = 'f32[16,128]{1,0:T(8,128)}', space=vmem, size = 0x2000, scoped, tag = 'scratch operand']
  #allocation4 [shape = 'f32[16,128]{1,0:T(8,128)}', space=vmem, size = 0x2000, scoped, tag = 'scratch operand']
  %s0 = inlined_call_operand.vmem [shape: bf16[128,128], index: 0, kind: input, shape index: {}]
  %s1 = inlined_call_operand.vmem [shape: bf16[128,128], index: 1, kind: input, shape index: {}]
  %s2 = inlined_call_operand.vmem [shape: bf16[16,128], index: 2, kind: input, shape index: {}]
  %s3 = inlined_call_operand.vmem [shape: bf16[16,128], index: 3, kind: input, shape index: {}]
  %s4 = inlined_call_operand.vmem [shape: bf16[16,128], index: 4, kind: input, shape index: {}]
  %s5 = inlined_call_operand.vmem [shape: bf16[128,128], index: 5, kind: input, shape index: {}]
  %s6 = inlined_call_operand.vmem [shape: bf16[128,128], index: 6, kind: input, shape index: {}]
  %s7 = inlined_call_operand.vmem [shape: f32[1,128], index: 7, kind: input, shape index: {}]
  %s8 = inlined_call_operand.vmem [shape: bf16[128,128], index: 8, kind: input, shape index: {}]
  %s9 = inlined_call_operand.vmem [shape: bf16[16,32], index: 9, kind: input, shape index: {}]
  %s10 = inlined_call_operand.vmem [shape: bf16[16,32], index: 10, kind: input, shape index: {}]
  %s11 = inlined_call_operand.vmem [shape: bf16[32,64], index: 11, kind: input, shape index: {}]
  %s12 = inlined_call_operand.vmem [shape: bf16[32,64], index: 12, kind: input, shape index: {}]
  %s13 = inlined_call_operand.vmem [shape: f32[1,64], index: 13, kind: input, shape index: {}]
  %s14 = inlined_call_operand.vmem [shape: bf16[32,64], index: 14, kind: input, shape index: {}]
  %s15 = inlined_call_operand.vmem [shape: bf16[32,64], index: 15, kind: input, shape index: {}]
  %s16 = inlined_call_operand.vmem [shape: f32[1,64], index: 16, kind: input, shape index: {}]
  %s17 = inlined_call_operand.vmem [shape: f32[16,32], index: 17, kind: output, shape index: {0}]
  %s18 = inlined_call_operand.vmem [shape: f32[16,32], index: 18, kind: output, shape index: {1}]
  %19 = xla_tuple %s17, %s18
  %s20 = sld [smem:[#allocation0]]
  $region94: #{_device_forward.1} parent=0
    _
  %s22 = ssub.s32 1, %s20
  %s23 = scalar_select 0, %s22, %s20
  // Predicated region
  $region2: #{_device_forward.1} parent=0 // pred_check
    _
  $region3: #{_device_forward.1} parent=0 // pred_check_branch
    %25 = sbr.rel (0) target = $region5
  $region4: #{_device_forward.1} parent=0 // pred_region
    _
  $region5: #{_device_forward.1} parent=0 // pred_fallthru
    _
  // Predicated region
  $region6: #{_device_forward.1} parent=0 // pred_check
    _
  $region7: #{_device_forward.1} parent=0 // pred_check_branch
    %27 = sbr.rel (0) target = $region9
  $region8: #{_device_forward.1} parent=0 // pred_region
    _
  $region9: #{_device_forward.1} parent=0 // pred_fallthru
    _
  // Predicated region
  $region10: #{_device_forward.1} parent=0 // pred_check
    _
  $region11: #{_device_forward.1} parent=0 // pred_check_branch
    %29 = sbr.rel (0) target = $region13
  $region12: #{_device_forward.1} parent=0 // pred_region
    _
  $region13: #{_device_forward.1} parent=0 // pred_fallthru
    _
  // Predicated region
  $region14: #{_device_forward.1} parent=0 // pred_check
    _
  $region15: #{_device_forward.1} parent=0 // pred_check_branch
    %31 = sbr.rel (0) target = $region17
  $region16: #{_device_forward.1} parent=0 // pred_region
    _
  $region17: #{_device_forward.1} parent=0 // pred_fallthru
    _
  // Predicated region
  $region18: #{_device_forward.1} parent=0 // pred_check
    _
  $region19: #{_device_forward.1} parent=0 // pred_check_branch
    %33 = sbr.rel (0) target = $region21
  $region20: #{_device_forward.1} parent=0 // pred_region
    _
  $region21: #{_device_forward.1} parent=0 // pred_fallthru
    _
  // Predicated region
  $region22: #{_device_forward.1} parent=0 // pred_check
    _
  $region23: #{_device_forward.1} parent=0 // pred_check_branch
    %35 = sbr.rel (0) target = $region25
  $region24: #{_device_forward.1} parent=0 // pred_region
    _
  $region25: #{_device_forward.1} parent=0 // pred_fallthru
    _
  // Predicated region
  $region26: #{_device_forward.1} parent=0 // pred_check
    _
  $region27: #{_device_forward.1} parent=0 // pred_check_branch
    %37 = sbr.rel (0) target = $region29
  $region28: #{_device_forward.1} parent=0 // pred_region
    _
  $region29: #{_device_forward.1} parent=0 // pred_fallthru
    _
  // Predicated region
  $region30: #{_device_forward.1} parent=0 // pred_check
    _
  $region31: #{_device_forward.1} parent=0 // pred_check_branch
    %39 = sbr.rel (0) target = $region33
  $region32: #{_device_forward.1} parent=0 // pred_region
    _
  $region33: #{_device_forward.1} parent=0 // pred_fallthru
    _
  // Predicated region
  $region34: #{_device_forward.1} parent=0 // pred_check
    _
  $region35: #{_device_forward.1} parent=0 // pred_check_branch
    %41 = sbr.rel (0) target = $region37
  $region36: #{_device_forward.1} parent=0 // pred_region
    _
  $region37: #{_device_forward.1} parent=0 // pred_fallthru
    _
  // Predicated region
  $region38: #{_device_forward.1} parent=0 // pred_check
    _
  $region39: #{_device_forward.1} parent=0 // pred_check_branch
    %43 = sbr.rel (0) target = $region41
  $region40: #{_device_forward.1} parent=0 // pred_region
    _
  $region41: #{_device_forward.1} parent=0 // pred_fallthru
    _
  // Predicated region
  $region42: #{_device_forward.1} parent=0 // pred_check
    _
  $region43: #{_device_forward.1} parent=0 // pred_check_branch
    %45 = sbr.rel (0) target = $region45
  $region44: #{_device_forward.1} parent=0 // pred_region
    _
  $region45: #{_device_forward.1} parent=0 // pred_fallthru
    _
  // Predicated region
  $region46: #{_device_forward.1} parent=0 // pred_check
    _
  $region47: #{_device_forward.1} parent=0 // pred_check_branch
    %47 = sbr.rel (0) target = $region49
  $region48: #{_device_forward.1} parent=0 // pred_region
    _
  $region49: #{_device_forward.1} parent=0 // pred_fallthru
    _
  // Predicated region
  $region50: #{_device_forward.1} parent=0 // pred_check
    _
  $region51: #{_device_forward.1} parent=0 // pred_check_branch
    %49 = sbr.rel (0) target = $region53
  $region52: #{_device_forward.1} parent=0 // pred_region
    _
  $region53: #{_device_forward.1} parent=0 // pred_fallthru
    _
  // Predicated region
  $region54: #{_device_forward.1} parent=0 // pred_check
    _
  $region55: #{_device_forward.1} parent=0 // pred_check_branch
    %51 = sbr.rel (0) target = $region57
  $region56: #{_device_forward.1} parent=0 // pred_region
    _
  $region57: #{_device_forward.1} parent=0 // pred_fallthru
    _
  // Predicated region
  $region58: #{_device_forward.1} parent=0 // pred_check
    _
  $region59: #{_device_forward.1} parent=0 // pred_check_branch
    %53 = sbr.rel (0) target = $region61
  $region60: #{_device_forward.1} parent=0 // pred_region
    _
  $region61: #{_device_forward.1} parent=0 // pred_fallthru
    _
  // Predicated region
  $region62: #{_device_forward.1} parent=0 // pred_check
    _
  $region63: #{_device_forward.1} parent=0 // pred_check_branch
    %55 = sbr.rel (0) target = $region65
  $region64: #{_device_forward.1} parent=0 // pred_region
    _
  $region65: #{_device_forward.1} parent=0 // pred_fallthru
    _
  // Predicated region
  $region66: #{_device_forward.1} parent=0 // pred_check
    _
  $region67: #{_device_forward.1} parent=0 // pred_check_branch
    %57 = sbr.rel (0) target = $region69
  $region68: #{_device_forward.1} parent=0 // pred_region
    _
  $region69: #{_device_forward.1} parent=0 // pred_fallthru
    _
  %p59 = scmp.eq.s32.totalorder 0, 0
  // Predicated region
  $region70: #{_device_forward.1} parent=0 // pred_check
    %p60 = pneg %p59
  $region71: #{_device_forward.1} parent=0 // pred_check_branch
    %62 = sbr.rel (%p60) target = $region73
  $region72: #{_device_forward.1} parent=0 // pred_region
    %63 = vst [vmem:[#allocation2] sm:$0xff] 0.0
    %64 = vst [vmem:[#allocation2 + $0x8] sm:$0xff] 0.0
    %65 = vst [vmem:[#allocation3] sm:$0xff] 0.0
    %66 = vst [vmem:[#allocation3 + $0x8] sm:$0xff] 0.0
    %67 = vst [vmem:[#allocation4] sm:$0xff] 0.0
    %68 = vst [vmem:[#allocation4 + $0x8] sm:$0xff] 0.0
  $region73: #{_device_forward.1} parent=0 // pred_fallthru
    _
  %v69 = vld [vmem:[%s0] sm:$0xf]
  %v70 = vld [vmem:[%s0 + $0x4] sm:$0xf]
  %v71 = vld [vmem:[%s0 + $0x8] sm:$0xf]
  %v72 = vld [vmem:[%s0 + $0xc] sm:$0xf]
  %v73 = vld [vmem:[%s0 + $0x10] sm:$0xf]
  %v74 = vld [vmem:[%s0 + $0x14] sm:$0xf]
  %v75 = vld [vmem:[%s0 + $0x18] sm:$0xf]
  %v76 = vld [vmem:[%s0 + $0x1c] sm:$0xf]
  %v77 = vld [vmem:[%s0 + $0x20] sm:$0xf]
  %v78 = vld [vmem:[%s0 + $0x24] sm:$0xf]
  %v79 = vld [vmem:[%s0 + $0x28] sm:$0xf]
  %v80 = vld [vmem:[%s0 + $0x2c] sm:$0xf]
  %v81 = vld [vmem:[%s0 + $0x30] sm:$0xf]
  %v82 = vld [vmem:[%s0 + $0x34] sm:$0xf]
  %v83 = vld [vmem:[%s0 + $0x38] sm:$0xf]
  %v84 = vld [vmem:[%s0 + $0x3c] sm:$0xf]
  %v85 = vld [vmem:[%s1] sm:$0xf]
  %v86 = vld [vmem:[%s1 + $0x4] sm:$0xf]
  %v87 = vld [vmem:[%s1 + $0x8] sm:$0xf]
  %v88 = vld [vmem:[%s1 + $0xc] sm:$0xf]
  %v89 = vld [vmem:[%s1 + $0x10] sm:$0xf]
  %v90 = vld [vmem:[%s1 + $0x14] sm:$0xf]
  %v91 = vld [vmem:[%s1 + $0x18] sm:$0xf]
  %v92 = vld [vmem:[%s1 + $0x1c] sm:$0xf]
  %v93 = vld [vmem:[%s1 + $0x20] sm:$0xf]
  %v94 = vld [vmem:[%s1 + $0x24] sm:$0xf]
  %v95 = vld [vmem:[%s1 + $0x28] sm:$0xf]
  %v96 = vld [vmem:[%s1 + $0x2c] sm:$0xf]
  %v97 = vld [vmem:[%s1 + $0x30] sm:$0xf]
  %v98 = vld [vmem:[%s1 + $0x34] sm:$0xf]
  %v99 = vld [vmem:[%s1 + $0x38] sm:$0xf]
  %v100 = vld [vmem:[%s1 + $0x3c] sm:$0xf]
  %v101 = vld [vmem:[%s5] sm:$0xf]
  %v102 = vld [vmem:[%s5 + $0x4] sm:$0xf]
  %v103 = vld [vmem:[%s5 + $0x8] sm:$0xf]
  %v104 = vld [vmem:[%s5 + $0xc] sm:$0xf]
  %v105 = vld [vmem:[%s5 + $0x10] sm:$0xf]
  %v106 = vld [vmem:[%s5 + $0x14] sm:$0xf]
  %v107 = vld [vmem:[%s5 + $0x18] sm:$0xf]
  %v108 = vld [vmem:[%s5 + $0x1c] sm:$0xf]
  %v109 = vld [vmem:[%s5 + $0x20] sm:$0xf]
  %v110 = vld [vmem:[%s5 + $0x24] sm:$0xf]
  %v111 = vld [vmem:[%s5 + $0x28] sm:$0xf]
  %v112 = vld [vmem:[%s5 + $0x2c] sm:$0xf]
  %v113 = vld [vmem:[%s5 + $0x30] sm:$0xf]
  %v114 = vld [vmem:[%s5 + $0x34] sm:$0xf]
  %v115 = vld [vmem:[%s5 + $0x38] sm:$0xf]
  %v116 = vld [vmem:[%s5 + $0x3c] sm:$0xf]
  %v117 = vld [vmem:[%s6] sm:$0xf]
  %v118 = vld [vmem:[%s6 + $0x4] sm:$0xf]
  %v119 = vld [vmem:[%s6 + $0x8] sm:$0xf]
  %v120 = vld [vmem:[%s6 + $0xc] sm:$0xf]
  %v121 = vld [vmem:[%s6 + $0x10] sm:$0xf]
  %v122 = vld [vmem:[%s6 + $0x14] sm:$0xf]
  %v123 = vld [vmem:[%s6 + $0x18] sm:$0xf]
  %v124 = vld [vmem:[%s6 + $0x1c] sm:$0xf]
  %v125 = vld [vmem:[%s6 + $0x20] sm:$0xf]
  %v126 = vld [vmem:[%s6 + $0x24] sm:$0xf]
  %v127 = vld [vmem:[%s6 + $0x28] sm:$0xf]
  %v128 = vld [vmem:[%s6 + $0x2c] sm:$0xf]
  %v129 = vld [vmem:[%s6 + $0x30] sm:$0xf]
  %v130 = vld [vmem:[%s6 + $0x34] sm:$0xf]
  %v131 = vld [vmem:[%s6 + $0x38] sm:$0xf]
  %v132 = vld [vmem:[%s6 + $0x3c] sm:$0xf]
  %v149 = vunpack.c.l.b16 %v85
  %v150 = vunpack.c.l.b16 %v86
  %v151 = vunpack.c.l.b16 %v87
  %v152 = vunpack.c.l.b16 %v88
  %v153 = vunpack.c.l.b16 %v89
  %v154 = vunpack.c.l.b16 %v90
  %v155 = vunpack.c.l.b16 %v91
  %v156 = vunpack.c.l.b16 %v92
  %v157 = vunpack.c.l.b16 %v93
  %v158 = vunpack.c.l.b16 %v94
  %v159 = vunpack.c.l.b16 %v95
  %v160 = vunpack.c.l.b16 %v96
  %v161 = vunpack.c.l.b16 %v97
  %v162 = vunpack.c.l.b16 %v98
  %v163 = vunpack.c.l.b16 %v99
  %v164 = vunpack.c.l.b16 %v100
  %v165 = vpack.c.b16 %v150, %v149
  %v166 = vpack.c.b16 %v152, %v151
  %v167 = vpack.c.b16 %v154, %v153
  %v168 = vpack.c.b16 %v156, %v155
  %v169 = vpack.c.b16 %v158, %v157
  %v170 = vpack.c.b16 %v160, %v159
  %v171 = vpack.c.b16 %v162, %v161
  %v172 = vpack.c.b16 %v164, %v163
  %v197 = vunpack.c.l.b16 %v117
  %v198 = vunpack.c.l.b16 %v118
  %v199 = vunpack.c.l.b16 %v119
  %v200 = vunpack.c.l.b16 %v120
  %v201 = vunpack.c.l.b16 %v121
  %v202 = vunpack.c.l.b16 %v122
  %v203 = vunpack.c.l.b16 %v123
  %v204 = vunpack.c.l.b16 %v124
  %v205 = vunpack.c.l.b16 %v125
  %v206 = vunpack.c.l.b16 %v126
  %v207 = vunpack.c.l.b16 %v127
  %v208 = vunpack.c.l.b16 %v128
  %v209 = vunpack.c.l.b16 %v129
  %v210 = vunpack.c.l.b16 %v130
  %v211 = vunpack.c.l.b16 %v131
  %v212 = vunpack.c.l.b16 %v132
  %v213 = vpack.c.b16 %v198, %v197
  %v214 = vpack.c.b16 %v200, %v199
  %v215 = vpack.c.b16 %v202, %v201
  %v216 = vpack.c.b16 %v204, %v203
  %v217 = vpack.c.b16 %v206, %v205
  %v218 = vpack.c.b16 %v208, %v207
  %v219 = vpack.c.b16 %v210, %v209
  %v220 = vpack.c.b16 %v212, %v211
  %229 = vmatpush.bf16.msra.mxu0 %v220
  %230 = vmatpush.bf16.msra.mxu0 %v219
  %231 = vmatpush.bf16.msra.mxu0 %v218
  %232 = vmatpush.bf16.msra.mxu0 %v217
  %233 = vmatpush.bf16.msra.mxu0 %v216
  %234 = vmatpush.bf16.msra.mxu0 %v215
  %235 = vmatpush.bf16.msra.mxu0 %v214
  %236 = vmatpush.bf16.msra.mxu0 %v213
  %237 = vmatmul.bf16.gmra.mxu0 %v165
  %v238 = vpop.f32.mrf.mxu0
  %v239 = vadd.f32 0.0, %v238
  %v240 = vpop.f32.mrf.mxu0
  %v241 = vadd.f32 0.0, %v240
  %242 = vmatmul.bf16.gmra.mxu0 %v166
  %v243 = vpop.f32.mrf.mxu0
  %v244 = vadd.f32 0.0, %v243
  %v245 = vpop.f32.mrf.mxu0
  %v246 = vadd.f32 0.0, %v245
  %247 = vmatmul.bf16.gmra.mxu0 %v167
  %v248 = vpop.f32.mrf.mxu0
  %v249 = vadd.f32 0.0, %v248
  %v250 = vpop.f32.mrf.mxu0
  %v251 = vadd.f32 0.0, %v250
  %252 = vmatmul.bf16.gmra.mxu0 %v168
  %v253 = vpop.f32.mrf.mxu0
  %v254 = vadd.f32 0.0, %v253
  %v255 = vpop.f32.mrf.mxu0
  %v256 = vadd.f32 0.0, %v255
  %257 = vmatmul.bf16.gmra.mxu0 %v169
  %v258 = vpop.f32.mrf.mxu0
  %v259 = vadd.f32 0.0, %v258
  %v260 = vpop.f32.mrf.mxu0
  %v261 = vadd.f32 0.0, %v260
  %262 = vmatmul.bf16.gmra.mxu0 %v170
  %v263 = vpop.f32.mrf.mxu0
  %v264 = vadd.f32 0.0, %v263
  %v265 = vpop.f32.mrf.mxu0
  %v266 = vadd.f32 0.0, %v265
  %267 = vmatmul.bf16.gmra.mxu0 %v171
  %v268 = vpop.f32.mrf.mxu0
  %v269 = vadd.f32 0.0, %v268
  %v270 = vpop.f32.mrf.mxu0
  %v271 = vadd.f32 0.0, %v270
  %272 = vmatmul.bf16.gmra.mxu0 %v172
  %v273 = vpop.f32.mrf.mxu0
  %v274 = vadd.f32 0.0, %v273
  %v275 = vpop.f32.mrf.mxu0
  %v276 = vadd.f32 0.0, %v275
  %277 = vdwg.mxu0
  %v294 = vunpack.c.l.b16 %v69
  %v295 = vunpack.c.l.b16 %v70
  %v296 = vunpack.c.l.b16 %v71
  %v297 = vunpack.c.l.b16 %v72
  %v298 = vunpack.c.l.b16 %v73
  %v299 = vunpack.c.l.b16 %v74
  %v300 = vunpack.c.l.b16 %v75
  %v301 = vunpack.c.l.b16 %v76
  %v302 = vunpack.c.l.b16 %v77
  %v303 = vunpack.c.l.b16 %v78
  %v304 = vunpack.c.l.b16 %v79
  %v305 = vunpack.c.l.b16 %v80
  %v306 = vunpack.c.l.b16 %v81
  %v307 = vunpack.c.l.b16 %v82
  %v308 = vunpack.c.l.b16 %v83
  %v309 = vunpack.c.l.b16 %v84
  %v310 = vpack.c.b16 %v295, %v294
  %v311 = vpack.c.b16 %v297, %v296
  %v312 = vpack.c.b16 %v299, %v298
  %v313 = vpack.c.b16 %v301, %v300
  %v314 = vpack.c.b16 %v303, %v302
  %v315 = vpack.c.b16 %v305, %v304
  %v316 = vpack.c.b16 %v307, %v306
  %v317 = vpack.c.b16 %v309, %v308
  %v342 = vunpack.c.l.b16 %v101
  %v343 = vunpack.c.l.b16 %v102
  %v344 = vunpack.c.l.b16 %v103
  %v345 = vunpack.c.l.b16 %v104
  %v346 = vunpack.c.l.b16 %v105
  %v347 = vunpack.c.l.b16 %v106
  %v348 = vunpack.c.l.b16 %v107
  %v349 = vunpack.c.l.b16 %v108
  %v350 = vunpack.c.l.b16 %v109
  %v351 = vunpack.c.l.b16 %v110
  %v352 = vunpack.c.l.b16 %v111
  %v353 = vunpack.c.l.b16 %v112
  %v354 = vunpack.c.l.b16 %v113
  %v355 = vunpack.c.l.b16 %v114
  %v356 = vunpack.c.l.b16 %v115
  %v357 = vunpack.c.l.b16 %v116
  %v358 = vpack.c.b16 %v343, %v342
  %v359 = vpack.c.b16 %v345, %v344
  %v360 = vpack.c.b16 %v347, %v346
  %v361 = vpack.c.b16 %v349, %v348
  %v362 = vpack.c.b16 %v351, %v350
  %v363 = vpack.c.b16 %v353, %v352
  %v364 = vpack.c.b16 %v355, %v354
  %v365 = vpack.c.b16 %v357, %v356
  %374 = vmatpush.bf16.msra.mxu0 %v365
  %375 = vmatpush.bf16.msra.mxu0 %v364
  %376 = vmatpush.bf16.msra.mxu0 %v363
  %377 = vmatpush.bf16.msra.mxu0 %v362
  %378 = vmatpush.bf16.msra.mxu0 %v361
  %379 = vmatpush.bf16.msra.mxu0 %v360
  %380 = vmatpush.bf16.msra.mxu0 %v359
  %381 = vmatpush.bf16.msra.mxu0 %v358
  %382 = vmatmul.bf16.gmra.mxu0 %v310
  %v383 = vpop.f32.mrf.mxu0
  %v384 = vadd.f32 %v239, %v383
  %v385 = vpop.f32.mrf.mxu0
  %v386 = vadd.f32 %v241, %v385
  %387 = vmatmul.bf16.gmra.mxu0 %v311
  %v388 = vpop.f32.mrf.mxu0
  %v389 = vadd.f32 %v244, %v388
  %v390 = vpop.f32.mrf.mxu0
  %v391 = vadd.f32 %v246, %v390
  %392 = vmatmul.bf16.gmra.mxu0 %v312
  %v393 = vpop.f32.mrf.mxu0
  %v394 = vadd.f32 %v249, %v393
  %v395 = vpop.f32.mrf.mxu0
  %v396 = vadd.f32 %v251, %v395
  %397 = vmatmul.bf16.gmra.mxu0 %v313
  %v398 = vpop.f32.mrf.mxu0
  %v399 = vadd.f32 %v254, %v398
  %v400 = vpop.f32.mrf.mxu0
  %v401 = vadd.f32 %v256, %v400
  %402 = vmatmul.bf16.gmra.mxu0 %v314
  %v403 = vpop.f32.mrf.mxu0
  %v404 = vadd.f32 %v259, %v403
  %v405 = vpop.f32.mrf.mxu0
  %v406 = vadd.f32 %v261, %v405
  %407 = vmatmul.bf16.gmra.mxu0 %v315
  %v408 = vpop.f32.mrf.mxu0
  %v409 = vadd.f32 %v264, %v408
  %v410 = vpop.f32.mrf.mxu0
  %v411 = vadd.f32 %v266, %v410
  %412 = vmatmul.bf16.gmra.mxu0 %v316
  %v413 = vpop.f32.mrf.mxu0
  %v414 = vadd.f32 %v269, %v413
  %v415 = vpop.f32.mrf.mxu0
  %v416 = vadd.f32 %v271, %v415
  %417 = vmatmul.bf16.gmra.mxu0 %v317
  %v418 = vpop.f32.mrf.mxu0
  %v419 = vadd.f32 %v274, %v418
  %v420 = vpop.f32.mrf.mxu0
  %v421 = vadd.f32 %v276, %v420
  %422 = vdwg.mxu0
  %v423 = vld [vmem:[%s7] sm:$0x1]
  %v425 = vperm.slane %v423, 0
  %v427 = vadd.f32 %v384, %v425
  %v428 = vadd.f32 %v386, %v425
  %v429 = vadd.f32 %v389, %v425
  %v430 = vadd.f32 %v391, %v425
  %v431 = vadd.f32 %v394, %v425
  %v432 = vadd.f32 %v396, %v425
  %v433 = vadd.f32 %v399, %v425
  %v434 = vadd.f32 %v401, %v425
  %v435 = vadd.f32 %v404, %v425
  %v436 = vadd.f32 %v406, %v425
  %v437 = vadd.f32 %v409, %v425
  %v438 = vadd.f32 %v411, %v425
  %v439 = vadd.f32 %v414, %v425
  %v440 = vadd.f32 %v416, %v425
  %v441 = vadd.f32 %v419, %v425
  %v442 = vadd.f32 %v421, %v425
  %v443 = vmax.f32 %v427, 0.0
  %v444 = vmax.f32 %v428, 0.0
  %v445 = vmax.f32 %v429, 0.0
  %v446 = vmax.f32 %v430, 0.0
  %v447 = vmax.f32 %v431, 0.0
  %v448 = vmax.f32 %v432, 0.0
  %v449 = vmax.f32 %v433, 0.0
  %v450 = vmax.f32 %v434, 0.0
  %v451 = vmax.f32 %v435, 0.0
  %v452 = vmax.f32 %v436, 0.0
  %v453 = vmax.f32 %v437, 0.0
  %v454 = vmax.f32 %v438, 0.0
  %v455 = vmax.f32 %v439, 0.0
  %v456 = vmax.f32 %v440, 0.0
  %v457 = vmax.f32 %v441, 0.0
  %v458 = vmax.f32 %v442, 0.0
  %v459 = vsub.f32 0.0, %v443
  %v460 = vsub.f32 0.0, %v444
  %v461 = vsub.f32 0.0, %v445
  %v462 = vsub.f32 0.0, %v446
  %v463 = vsub.f32 0.0, %v447
  %v464 = vsub.f32 0.0, %v448
  %v465 = vsub.f32 0.0, %v449
  %v466 = vsub.f32 0.0, %v450
  %v467 = vsub.f32 0.0, %v451
  %v468 = vsub.f32 0.0, %v452
  %v469 = vsub.f32 0.0, %v453
  %v470 = vsub.f32 0.0, %v454
  %v471 = vsub.f32 0.0, %v455
  %v472 = vsub.f32 0.0, %v456
  %v473 = vsub.f32 0.0, %v457
  %v474 = vsub.f32 0.0, %v458
  %v475 = vmul.f32 %v459, 1.442695
  %v476 = vpow.pop %v475
  %v477 = vmul.f32 %v460, 1.442695
  %v478 = vpow.pop %v477
  %v479 = vmul.f32 %v461, 1.442695
  %v480 = vpow.pop %v479
  %v481 = vmul.f32 %v462, 1.442695
  %v482 = vpow.pop %v481
  %v483 = vmul.f32 %v463, 1.442695
  %v484 = vpow.pop %v483
  %v485 = vmul.f32 %v464, 1.442695
  %v486 = vpow.pop %v485
  %v487 = vmul.f32 %v465, 1.442695
  %v488 = vpow.pop %v487
  %v489 = vmul.f32 %v466, 1.442695
  %v490 = vpow.pop %v489
  %v491 = vmul.f32 %v467, 1.442695
  %v492 = vpow.pop %v491
  %v493 = vmul.f32 %v468, 1.442695
  %v494 = vpow.pop %v493
  %v495 = vmul.f32 %v469, 1.442695
  %v496 = vpow.pop %v495
  %v497 = vmul.f32 %v470, 1.442695
  %v498 = vpow.pop %v497
  %v499 = vmul.f32 %v471, 1.442695
  %v500 = vpow.pop %v499
  %v501 = vmul.f32 %v472, 1.442695
  %v502 = vpow.pop %v501
  %v503 = vmul.f32 %v473, 1.442695
  %v504 = vpow.pop %v503
  %v505 = vmul.f32 %v474, 1.442695
  %v506 = vpow.pop %v505
  %v507 = vadd.f32 %v476, 1.0
  %v508 = vadd.f32 %v478, 1.0
  %v509 = vadd.f32 %v480, 1.0
  %v510 = vadd.f32 %v482, 1.0
  %v511 = vadd.f32 %v484, 1.0
  %v512 = vadd.f32 %v486, 1.0
  %v513 = vadd.f32 %v488, 1.0
  %v514 = vadd.f32 %v490, 1.0
  %v515 = vadd.f32 %v492, 1.0
  %v516 = vadd.f32 %v494, 1.0
  %v517 = vadd.f32 %v496, 1.0
  %v518 = vadd.f32 %v498, 1.0
  %v519 = vadd.f32 %v500, 1.0
  %v520 = vadd.f32 %v502, 1.0
  %v521 = vadd.f32 %v504, 1.0
  %v522 = vadd.f32 %v506, 1.0
  %v523 = vrcp.pop %v507
  %v524 = vrcp.pop %v508
  %v525 = vrcp.pop %v509
  %v526 = vrcp.pop %v510
  %v527 = vrcp.pop %v511
  %v528 = vrcp.pop %v512
  %v529 = vrcp.pop %v513
  %v530 = vrcp.pop %v514
  %v531 = vrcp.pop %v515
  %v532 = vrcp.pop %v516
  %v533 = vrcp.pop %v517
  %v534 = vrcp.pop %v518
  %v535 = vrcp.pop %v519
  %v536 = vrcp.pop %v520
  %v537 = vrcp.pop %v521
  %v538 = vrcp.pop %v522
  %v539 = vpack.c.bf16 %v524, %v523
  %v540 = vpack.c.bf16 %v526, %v525
  %v541 = vpack.c.bf16 %v528, %v527
  %v542 = vpack.c.bf16 %v530, %v529
  %v543 = vpack.c.bf16 %v532, %v531
  %v544 = vpack.c.bf16 %v534, %v533
  %v545 = vpack.c.bf16 %v536, %v535
  %v546 = vpack.c.bf16 %v538, %v537
  %v547 = vld [vmem:[%s8] sm:$0xf]
  %v548 = vld [vmem:[%s8 + $0x4] sm:$0xf]
  %v549 = vld [vmem:[%s8 + $0x8] sm:$0xf]
  %v550 = vld [vmem:[%s8 + $0xc] sm:$0xf]
  %v551 = vld [vmem:[%s8 + $0x10] sm:$0xf]
  %v552 = vld [vmem:[%s8 + $0x14] sm:$0xf]
  %v553 = vld [vmem:[%s8 + $0x18] sm:$0xf]
  %v554 = vld [vmem:[%s8 + $0x1c] sm:$0xf]
  %v555 = vld [vmem:[%s8 + $0x20] sm:$0xf]
  %v556 = vld [vmem:[%s8 + $0x24] sm:$0xf]
  %v557 = vld [vmem:[%s8 + $0x28] sm:$0xf]
  %v558 = vld [vmem:[%s8 + $0x2c] sm:$0xf]
  %v559 = vld [vmem:[%s8 + $0x30] sm:$0xf]
  %v560 = vld [vmem:[%s8 + $0x34] sm:$0xf]
  %v561 = vld [vmem:[%s8 + $0x38] sm:$0xf]
  %v562 = vld [vmem:[%s8 + $0x3c] sm:$0xf]
  %v579 = vunpack.c.l.b16 %v547
  %v580 = vunpack.c.l.b16 %v548
  %v581 = vunpack.c.l.b16 %v549
  %v582 = vunpack.c.l.b16 %v550
  %v583 = vunpack.c.l.b16 %v551
  %v584 = vunpack.c.l.b16 %v552
  %v585 = vunpack.c.l.b16 %v553
  %v586 = vunpack.c.l.b16 %v554
  %v587 = vunpack.c.l.b16 %v555
  %v588 = vunpack.c.l.b16 %v556
  %v589 = vunpack.c.l.b16 %v557
  %v590 = vunpack.c.l.b16 %v558
  %v591 = vunpack.c.l.b16 %v559
  %v592 = vunpack.c.l.b16 %v560
  %v593 = vunpack.c.l.b16 %v561
  %v594 = vunpack.c.l.b16 %v562
  %v595 = vpack.c.b16 %v580, %v579
  %v596 = vpack.c.b16 %v582, %v581
  %v597 = vpack.c.b16 %v584, %v583
  %v598 = vpack.c.b16 %v586, %v585
  %v599 = vpack.c.b16 %v588, %v587
  %v600 = vpack.c.b16 %v590, %v589
  %v601 = vpack.c.b16 %v592, %v591
  %v602 = vpack.c.b16 %v594, %v593
  %611 = vmatpush.bf16.msra.mxu0 %v602
  %612 = vmatpush.bf16.msra.mxu0 %v601
  %613 = vmatpush.bf16.msra.mxu0 %v600
  %614 = vmatpush.bf16.msra.mxu0 %v599
  %615 = vmatpush.bf16.msra.mxu0 %v598
  %616 = vmatpush.bf16.msra.mxu0 %v597
  %617 = vmatpush.bf16.msra.mxu0 %v596
  %618 = vmatpush.bf16.msra.mxu0 %v595
  %619 = vmatmul.bf16.gmra.mxu0 %v539
  %v620 = vpop.f32.mrf.mxu0
  %v621 = vadd.f32 0.0, %v620
  %v622 = vpop.f32.mrf.mxu0
  %v623 = vadd.f32 0.0, %v622
  %624 = vmatmul.bf16.gmra.mxu0 %v540
  %v625 = vpop.f32.mrf.mxu0
  %v626 = vadd.f32 0.0, %v625
  %v627 = vpop.f32.mrf.mxu0
  %v628 = vadd.f32 0.0, %v627
  %629 = vmatmul.bf16.gmra.mxu0 %v541
  %v630 = vpop.f32.mrf.mxu0
  %v631 = vadd.f32 0.0, %v630
  %v632 = vpop.f32.mrf.mxu0
  %v633 = vadd.f32 0.0, %v632
  %634 = vmatmul.bf16.gmra.mxu0 %v542
  %v635 = vpop.f32.mrf.mxu0
  %v636 = vadd.f32 0.0, %v635
  %v637 = vpop.f32.mrf.mxu0
  %v638 = vadd.f32 0.0, %v637
  %639 = vmatmul.bf16.gmra.mxu0 %v543
  %v640 = vpop.f32.mrf.mxu0
  %v641 = vadd.f32 0.0, %v640
  %v642 = vpop.f32.mrf.mxu0
  %v643 = vadd.f32 0.0, %v642
  %644 = vmatmul.bf16.gmra.mxu0 %v544
  %v645 = vpop.f32.mrf.mxu0
  %v646 = vadd.f32 0.0, %v645
  %v647 = vpop.f32.mrf.mxu0
  %v648 = vadd.f32 0.0, %v647
  %649 = vmatmul.bf16.gmra.mxu0 %v545
  %v650 = vpop.f32.mrf.mxu0
  %v651 = vadd.f32 0.0, %v650
  %v652 = vpop.f32.mrf.mxu0
  %v653 = vadd.f32 0.0, %v652
  %654 = vmatmul.bf16.gmra.mxu0 %v546
  %v655 = vpop.f32.mrf.mxu0
  %v656 = vadd.f32 0.0, %v655
  %v657 = vpop.f32.mrf.mxu0
  %v658 = vadd.f32 0.0, %v657
  %659 = vdwg.mxu0
  %v660 = vpack.c.bf16 %v621, %v621
  %v661 = vpack.c.bf16 %v623, %v623
  %v662 = vpack.c.bf16 %v626, %v626
  %v663 = vpack.c.bf16 %v628, %v628
  %v664 = vpack.c.bf16 %v631, %v631
  %v665 = vpack.c.bf16 %v633, %v633
  %v666 = vpack.c.bf16 %v636, %v636
  %v667 = vpack.c.bf16 %v638, %v638
  %v668 = vpack.c.bf16 %v641, %v641
  %v669 = vpack.c.bf16 %v643, %v643
  %v670 = vpack.c.bf16 %v646, %v646
  %v671 = vpack.c.bf16 %v648, %v648
  %v672 = vpack.c.bf16 %v651, %v651
  %v673 = vpack.c.bf16 %v653, %v653
  %v674 = vpack.c.bf16 %v656, %v656
  %v675 = vpack.c.bf16 %v658, %v658
  %v676 = vunpack.c.l.bf16 %v69
  %v677 = vunpack.c.l.bf16 %v70
  %v678 = vunpack.c.l.bf16 %v71
  %v679 = vunpack.c.l.bf16 %v72
  %v680 = vunpack.c.l.bf16 %v73
  %v681 = vunpack.c.l.bf16 %v74
  %v682 = vunpack.c.l.bf16 %v75
  %v683 = vunpack.c.l.bf16 %v76
  %v684 = vunpack.c.l.bf16 %v77
  %v685 = vunpack.c.l.bf16 %v78
  %v686 = vunpack.c.l.bf16 %v79
  %v687 = vunpack.c.l.bf16 %v80
  %v688 = vunpack.c.l.bf16 %v81
  %v689 = vunpack.c.l.bf16 %v82
  %v690 = vunpack.c.l.bf16 %v83
  %v691 = vunpack.c.l.bf16 %v84
  %v692 = vunpack.c.l.bf16 %v660
  %v693 = vunpack.c.l.bf16 %v661
  %v694 = vunpack.c.l.bf16 %v662
  %v695 = vunpack.c.l.bf16 %v663
  %v696 = vunpack.c.l.bf16 %v664
  %v697 = vunpack.c.l.bf16 %v665
  %v698 = vunpack.c.l.bf16 %v666
  %v699 = vunpack.c.l.bf16 %v667
  %v700 = vunpack.c.l.bf16 %v668
  %v701 = vunpack.c.l.bf16 %v669
  %v702 = vunpack.c.l.bf16 %v670
  %v703 = vunpack.c.l.bf16 %v671
  %v704 = vunpack.c.l.bf16 %v672
  %v705 = vunpack.c.l.bf16 %v673
  %v706 = vunpack.c.l.bf16 %v674
  %v707 = vunpack.c.l.bf16 %v675
  %v708 = vmul.f32 %v676, %v692
  %v709 = vmul.f32 %v677, %v693
  %v710 = vmul.f32 %v678, %v694
  %v711 = vmul.f32 %v679, %v695
  %v712 = vmul.f32 %v680, %v696
  %v713 = vmul.f32 %v681, %v697
  %v714 = vmul.f32 %v682, %v698
  %v715 = vmul.f32 %v683, %v699
  %v716 = vmul.f32 %v684, %v700
  %v717 = vmul.f32 %v685, %v701
  %v718 = vmul.f32 %v686, %v702
  %v719 = vmul.f32 %v687, %v703
  %v720 = vmul.f32 %v688, %v704
  %v721 = vmul.f32 %v689, %v705
  %v722 = vmul.f32 %v690, %v706
  %v723 = vmul.f32 %v691, %v707
  %v724 = vpack.c.bf16 %v709, %v708
  %v725 = vpack.c.bf16 %v711, %v710
  %v726 = vpack.c.bf16 %v713, %v712
  %v727 = vpack.c.bf16 %v715, %v714
  %v728 = vpack.c.bf16 %v717, %v716
  %v729 = vpack.c.bf16 %v719, %v718
  %v730 = vpack.c.bf16 %v721, %v720
  %v731 = vpack.c.bf16 %v723, %v722
  %v732 = vld [vmem:[#allocation2] sm:$0xff]
  %v733 = vld [vmem:[#allocation2 + $0x8] sm:$0xff]
  %v734 = vld [vmem:[%s2] sm:$0xf]
  %v735 = vld [vmem:[%s2 + $0x4] sm:$0xf]
  %v738 = vunpack.c.l.b16 %v734
  %v739 = vunpack.c.l.b16 %v735
  %v740 = vpack.c.b16 %v739, %v738
  %742 = vmatpush.bf16.msra.mxu0 %v731
  %743 = vmatpush.bf16.msra.mxu0 %v730
  %744 = vmatpush.bf16.msra.mxu0 %v729
  %745 = vmatpush.bf16.msra.mxu0 %v728
  %746 = vmatpush.bf16.msra.mxu0 %v727
  %747 = vmatpush.bf16.msra.mxu0 %v726
  %748 = vmatpush.bf16.msra.mxu0 %v725
  %749 = vmatpush.bf16.msra.mxu0 %v724
  %750 = vmatmul.bf16.gmra.mxu0 %v740
  %v751 = vpop.f32.mrf.mxu0
  %v752 = vadd.f32 0.0, %v751
  %v753 = vpop.f32.mrf.mxu0
  %v754 = vadd.f32 0.0, %v753
  %755 = vdwg.mxu0
  %v756 = vadd.f32 %v732, %v752
  %v757 = vadd.f32 %v733, %v754
  %758 = vst [vmem:[#allocation2] sm:$0xff] %v756
  %759 = vst [vmem:[#allocation2 + $0x8] sm:$0xff] %v757
  %v760 = vld [vmem:[#allocation3] sm:$0xff]
  %v761 = vld [vmem:[#allocation3 + $0x8] sm:$0xff]
  %v762 = vld [vmem:[%s3] sm:$0xf]
  %v763 = vld [vmem:[%s3 + $0x4] sm:$0xf]
  %v766 = vunpack.c.l.b16 %v762
  %v767 = vunpack.c.l.b16 %v763
  %v768 = vpack.c.b16 %v767, %v766
  %770 = vmatpush.bf16.msra.mxu0 %v731
  %771 = vmatpush.bf16.msra.mxu0 %v730
  %772 = vmatpush.bf16.msra.mxu0 %v729
  %773 = vmatpush.bf16.msra.mxu0 %v728
  %774 = vmatpush.bf16.msra.mxu0 %v727
  %775 = vmatpush.bf16.msra.mxu0 %v726
  %776 = vmatpush.bf16.msra.mxu0 %v725
  %777 = vmatpush.bf16.msra.mxu0 %v724
  %778 = vmatmul.bf16.gmra.mxu0 %v768
  %v779 = vpop.f32.mrf.mxu0
  %v780 = vadd.f32 0.0, %v779
  %v781 = vpop.f32.mrf.mxu0
  %v782 = vadd.f32 0.0, %v781
  %783 = vdwg.mxu0
  %v784 = vadd.f32 %v760, %v780
  %v785 = vadd.f32 %v761, %v782
  %786 = vst [vmem:[#allocation3] sm:$0xff] %v784
  %787 = vst [vmem:[#allocation3 + $0x8] sm:$0xff] %v785
  %v788 = vld [vmem:[#allocation4] sm:$0xff]
  %v789 = vld [vmem:[#allocation4 + $0x8] sm:$0xff]
  %v790 = vld [vmem:[%s4] sm:$0xf]
  %v791 = vld [vmem:[%s4 + $0x4] sm:$0xf]
  %v794 = vunpack.c.l.b16 %v790
  %v795 = vunpack.c.l.b16 %v791
  %v796 = vpack.c.b16 %v795, %v794
  %798 = vmatpush.bf16.msra.mxu0 %v731
  %799 = vmatpush.bf16.msra.mxu0 %v730
  %800 = vmatpush.bf16.msra.mxu0 %v729
  %801 = vmatpush.bf16.msra.mxu0 %v728
  %802 = vmatpush.bf16.msra.mxu0 %v727
  %803 = vmatpush.bf16.msra.mxu0 %v726
  %804 = vmatpush.bf16.msra.mxu0 %v725
  %805 = vmatpush.bf16.msra.mxu0 %v724
  %806 = vmatmul.bf16.gmra.mxu0 %v796
  %v807 = vpop.f32.mrf.mxu0
  %v808 = vadd.f32 0.0, %v807
  %v809 = vpop.f32.mrf.mxu0
  %v810 = vadd.f32 0.0, %v809
  %811 = vdwg.mxu0
  %v812 = vadd.f32 %v788, %v808
  %v813 = vadd.f32 %v789, %v810
  %814 = vst [vmem:[#allocation4] sm:$0xff] %v812
  %815 = vst [vmem:[#allocation4 + $0x8] sm:$0xff] %v813
  // Predicated region
  $region74: #{_device_forward.1} parent=0 // pred_check
    %p816 = pneg %p59
  $region75: #{_device_forward.1} parent=0 // pred_check_branch
    %818 = sbr.rel (%p816) target = $region77
  $region76: #{_device_forward.1} parent=0 // pred_region
    %v819 = vld [vmem:[#allocation2] sm:$0xff]
    %v820 = vld [vmem:[#allocation2 + $0x8] sm:$0xff]
    %v821 = vld [vmem:[#allocation3] sm:$0xff]
    %v822 = vld [vmem:[#allocation3 + $0x8] sm:$0xff]
    %825 = vrot.lane.b32.xlu0 %v821, 96
    %v826 = vpop.permute.xlu0 %825
    %827 = vrot.lane.b32.xlu0 %v822, 96
    %v828 = vpop.permute.xlu0 %827
    %v831 = vadd.f32 %v819, %v826
    %v832 = vadd.f32 %v820, %v828
    %v833 = vld [vmem:[#allocation4] sm:$0xff]
    %v834 = vld [vmem:[#allocation4 + $0x8] sm:$0xff]
    %837 = vrot.lane.b32.xlu0 %v833, 96
    %v838 = vpop.permute.xlu0 %837
    %839 = vrot.lane.b32.xlu0 %v834, 96
    %v840 = vpop.permute.xlu0 %839
    %v843 = vadd.f32 %v833, %v838
    %v844 = vadd.f32 %v834, %v840
    %v845 = vpack.c.bf16 %v832, %v831
    %v846 = vld [vmem:[%s11] sm:$0xf]
    %v847 = vld [vmem:[%s11 + $0x4] sm:$0xf]
    %v848 = vld [vmem:[%s11 + $0x8] sm:$0xf]
    %v849 = vld [vmem:[%s11 + $0xc] sm:$0xf]
    %v850 = vld [vmem:[%s9] sm:$0xf]
    %v851 = vld [vmem:[%s9 + $0x4] sm:$0xf]
    %v852 = vld [vmem:[%s12] sm:$0xf]
    %v853 = vld [vmem:[%s12 + $0x4] sm:$0xf]
    %v854 = vld [vmem:[%s12 + $0x8] sm:$0xf]
    %v855 = vld [vmem:[%s12 + $0xc] sm:$0xf]
    %v858 = vunpack.c.l.b16 %v850
    %v859 = vunpack.c.l.b16 %v851
    %v860 = vpack.c.b16 %v859, %v858
    %v865 = vunpack.c.l.b16 %v852
    %v866 = vunpack.c.l.b16 %v853
    %v867 = vunpack.c.l.b16 %v854
    %v868 = vunpack.c.l.b16 %v855
    %v869 = vpack.c.b16 %v866, %v865
    %v870 = vpack.c.b16 %v868, %v867
    %vm873 = vcmask 261120
    %v875 = vsel %vm873, %v860, 0
    %877 = vmatpush.bf16.msra.mxu0 0
    %878 = vmatpush.bf16.msra.mxu0 0
    %879 = vmatpush.bf16.msra.mxu0 0
    %880 = vmatpush.bf16.msra.mxu0 0
    %881 = vmatpush.bf16.msra.mxu0 0
    %882 = vmatpush.bf16.msra.mxu0 0
    %883 = vmatpush.bf16.msra.mxu0 %v870
    %884 = vmatpush.bf16.msra.mxu0 %v869
    %885 = vmatmul.bf16.gmra.mxu0 %v875
    %v886 = vpop.f32.mrf.mxu0
    %v887 = vadd.f32 0.0, %v886
    %v888 = vpop.f32.mrf.mxu0
    %v889 = vadd.f32 0.0, %v888
    %890 = vdwg.mxu0
    %v895 = vunpack.c.l.b16 %v846
    %v896 = vunpack.c.l.b16 %v847
    %v897 = vunpack.c.l.b16 %v848
    %v898 = vunpack.c.l.b16 %v849
    %v899 = vpack.c.b16 %v896, %v895
    %v900 = vpack.c.b16 %v898, %v897
    %v904 = vsel %vm873, %v845, 0
    %906 = vmatpush.bf16.msra.mxu0 0
    %907 = vmatpush.bf16.msra.mxu0 0
    %908 = vmatpush.bf16.msra.mxu0 0
    %909 = vmatpush.bf16.msra.mxu0 0
    %910 = vmatpush.bf16.msra.mxu0 0
    %911 = vmatpush.bf16.msra.mxu0 0
    %912 = vmatpush.bf16.msra.mxu0 %v900
    %913 = vmatpush.bf16.msra.mxu0 %v899
    %914 = vmatmul.bf16.gmra.mxu0 %v904
    %v915 = vpop.f32.mrf.mxu0
    %v916 = vadd.f32 %v887, %v915
    %v917 = vpop.f32.mrf.mxu0
    %v918 = vadd.f32 %v889, %v917
    %919 = vdwg.mxu0
    %v920 = vld [vmem:[%s13] sm:$0x1]
    %v922 = vperm.slane %v920, 0
    %v924 = vadd.f32 %v916, %v922
    %v925 = vadd.f32 %v918, %v922
    %v926 = vmax.f32 %v924, 0.0
    %v927 = vmax.f32 %v925, 0.0
    %v928 = vadd.f32 %v831, %v926
    %v929 = vadd.f32 %v832, %v927
    %932 = vrot.lane.b32.xlu0 %v926, 96
    %v933 = vpop.permute.xlu0 %932
    %934 = vrot.lane.b32.xlu0 %v927, 96
    %v935 = vpop.permute.xlu0 %934
    %v938 = vadd.f32 %v928, %v933
    %v939 = vadd.f32 %v929, %v935
    %940 = vst.msk [vmem:[%s17] sm:$0xff] %vm873, %v938
    %941 = vst.msk [vmem:[%s17 + $0x8] sm:$0xff] %vm873, %v939
    %v942 = vpack.c.bf16 %v844, %v843
    %v943 = vld [vmem:[%s14] sm:$0xf]
    %v944 = vld [vmem:[%s14 + $0x4] sm:$0xf]
    %v945 = vld [vmem:[%s14 + $0x8] sm:$0xf]
    %v946 = vld [vmem:[%s14 + $0xc] sm:$0xf]
    %v947 = vld [vmem:[%s10] sm:$0xf]
    %v948 = vld [vmem:[%s10 + $0x4] sm:$0xf]
    %v949 = vld [vmem:[%s15] sm:$0xf]
    %v950 = vld [vmem:[%s15 + $0x4] sm:$0xf]
    %v951 = vld [vmem:[%s15 + $0x8] sm:$0xf]
    %v952 = vld [vmem:[%s15 + $0xc] sm:$0xf]
    %v955 = vunpack.c.l.b16 %v947
    %v956 = vunpack.c.l.b16 %v948
    %v957 = vpack.c.b16 %v956, %v955
    %v962 = vunpack.c.l.b16 %v949
    %v963 = vunpack.c.l.b16 %v950
    %v964 = vunpack.c.l.b16 %v951
    %v965 = vunpack.c.l.b16 %v952
    %v966 = vpack.c.b16 %v963, %v962
    %v967 = vpack.c.b16 %v965, %v964
    %v971 = vsel %vm873, %v957, 0
    %973 = vmatpush.bf16.msra.mxu0 0
    %974 = vmatpush.bf16.msra.mxu0 0
    %975 = vmatpush.bf16.msra.mxu0 0
    %976 = vmatpush.bf16.msra.mxu0 0
    %977 = vmatpush.bf16.msra.mxu0 0
    %978 = vmatpush.bf16.msra.mxu0 0
    %979 = vmatpush.bf16.msra.mxu0 %v967
    %980 = vmatpush.bf16.msra.mxu0 %v966
    %981 = vmatmul.bf16.gmra.mxu0 %v971
    %v982 = vpop.f32.mrf.mxu0
    %v983 = vadd.f32 0.0, %v982
    %v984 = vpop.f32.mrf.mxu0
    %v985 = vadd.f32 0.0, %v984
    %986 = vdwg.mxu0
    %988 = vrot.lane.b32.xlu0 %v942, 64
    %v989 = vpop.permute.xlu0 %988
    %v994 = vunpack.c.l.b16 %v943
    %v995 = vunpack.c.l.b16 %v944
    %v996 = vunpack.c.l.b16 %v945
    %v997 = vunpack.c.l.b16 %v946
    %v998 = vpack.c.b16 %v995, %v994
    %v999 = vpack.c.b16 %v997, %v996
    %v1003 = vsel %vm873, %v989, 0
    %1005 = vmatpush.bf16.msra.mxu0 0
    %1006 = vmatpush.bf16.msra.mxu0 0
    %1007 = vmatpush.bf16.msra.mxu0 0
    %1008 = vmatpush.bf16.msra.mxu0 0
    %1009 = vmatpush.bf16.msra.mxu0 0
    %1010 = vmatpush.bf16.msra.mxu0 0
    %1011 = vmatpush.bf16.msra.mxu0 %v999
    %1012 = vmatpush.bf16.msra.mxu0 %v998
    %1013 = vmatmul.bf16.gmra.mxu0 %v1003
    %v1014 = vpop.f32.mrf.mxu0
    %v1015 = vadd.f32 %v983, %v1014
    %v1016 = vpop.f32.mrf.mxu0
    %v1017 = vadd.f32 %v985, %v1016
    %1018 = vdwg.mxu0
    %v1019 = vld [vmem:[%s16] sm:$0x1]
    %v1021 = vperm.slane %v1019, 0
    %v1023 = vadd.f32 %v1015, %v1021
    %v1024 = vadd.f32 %v1017, %v1021
    %v1025 = vmax.f32 %v1023, 0.0
    %v1026 = vmax.f32 %v1024, 0.0
    %1029 = vrot.lane.b32.xlu0 %v1025, 64
    %v1030 = vpop.permute.xlu0 %1029
    %1031 = vrot.lane.b32.xlu0 %v1026, 64
    %v1032 = vpop.permute.xlu0 %1031
    %v1035 = vadd.f32 %v843, %v1030
    %v1036 = vadd.f32 %v844, %v1032
    %1037 = vrot.lane.b32.xlu0 %v1025, 32
    %v1038 = vpop.permute.xlu0 %1037
    %1039 = vrot.lane.b32.xlu0 %v1026, 32
    %v1040 = vpop.permute.xlu0 %1039
    %v1043 = vadd.f32 %v1035, %v1038
    %v1044 = vadd.f32 %v1036, %v1040
    %1047 = vrot.lane.b32.xlu0 %v1043, 64
    %v1048 = vpop.permute.xlu0 %1047
    %1049 = vrot.lane.b32.xlu0 %v1044, 64
    %v1050 = vpop.permute.xlu0 %1049
    %1053 = vst.msk [vmem:[%s18] sm:$0xff] %vm873, %v1048
    %1054 = vst.msk [vmem:[%s18 + $0x8] sm:$0xff] %vm873, %v1050
  $region77: #{_device_forward.1} parent=0 // pred_fallthru
    _
  // Predicated region
  $region78: #{_device_forward.1} parent=0 // pred_check
    _
  $region79: #{_device_forward.1} parent=0 // pred_check_branch
    %1056 = sbr.rel (0) target = $region81
  $region80: #{_device_forward.1} parent=0 // pred_region
    _
  $region81: #{_device_forward.1} parent=0 // pred_fallthru
    _
  // Predicated region
  $region82: #{_device_forward.1} parent=0 // pred_check
    _
  $region83: #{_device_forward.1} parent=0 // pred_check_branch
    %1058 = sbr.rel (0) target = $region85
  $region84: #{_device_forward.1} parent=0 // pred_region
    _
  $region85: #{_device_forward.1} parent=0 // pred_fallthru
    _
  // Predicated region
  $region86: #{_device_forward.1} parent=0 // pred_check
    _
  $region87: #{_device_forward.1} parent=0 // pred_check_branch
    %1060 = sbr.rel (0) target = $region89
  $region88: #{_device_forward.1} parent=0 // pred_region
    _
  $region89: #{_device_forward.1} parent=0 // pred_fallthru
    _
  // Predicated region
  $region90: #{_device_forward.1} parent=0 // pred_check
    _
  $region91: #{_device_forward.1} parent=0 // pred_check_branch
    %1062 = sbr.rel (0) target = $region93
  $region92: #{_device_forward.1} parent=0 // pred_region
    _
  $region93: #{_device_forward.1} parent=0 // pred_fallthru
    _

</llo_original>
